<compile_context>
chip_gen: v6e
topology: v6e:2x2x1
jax: 0.10.0
libtpu: 0.0.40
codegen_flags: <defaults>
</compile_context>

<pallas_src>
import jax
import jax.numpy as jnp
import numpy as np
from jax.experimental import pallas as pl
from jax.experimental.pallas import tpu as pltpu


def _self_attn_kernel(gamma_ref,            # SMEM (1, 1) scalar gamma
                      x_ref,                # VMEM (Bt, L, H)
                      wqkT_ref, bqk_ref,    # (H, 2H) pre-transposed fused, (1, 2H)
                      wvT_ref, bv_ref,      # (H, H) pre-transposed, (1, H)
                      out_ref):             # VMEM (Bt, L*H) lane-dense output
    Bt, L, H = x_ref.shape
    x3 = x_ref[...]                                    # (Bt, L, H)
    x2 = x3.reshape(Bt * L, H)                         # leading-dim fold only (free)

    # Fused Q/K projection: one (Bt*L, H) x (H, 2H) matmul; weights pre-transposed
    # in the wrapper so the MXU consumes them directly.
    qk = jnp.dot(x2, wqkT_ref[...], preferred_element_type=jnp.float32) + bqk_ref[...]
    q3 = qk[:, :H].reshape(Bt, L, H)
    k3 = qk[:, H:].reshape(Bt, L, H)

    # energy[b] = q[b]^T @ k[b] -> (H, H); contraction over L, no explicit transpose.
    energy = jnp.einsum('blh,blg->bhg', q3, k3, preferred_element_type=jnp.float32)

    # Numerically stable softmax over the last (hidden) axis, in f32.
    m = jnp.max(energy, axis=-1, keepdims=True)
    e = jnp.exp(energy - m)
    attn = e / jnp.sum(e, axis=-1, keepdims=True)      # (Bt, H, H)

    # V projection deferred until after softmax so q/k are dead before v/o are live.
    v = jnp.dot(x2, wvT_ref[...], preferred_element_type=jnp.float32) + bv_ref[...]
    v3 = v.reshape(Bt, L, H)

    # out[b] = v[b] @ attn[b]^T -> (L, H); contraction over the last dim of both.
    o = jnp.einsum('bli,bji->blj', v3, attn, preferred_element_type=jnp.float32)

    y3 = gamma_ref[0, 0] * o + x3                      # (Bt, L, H)

    # Assemble a lane-dense (Bt, L*H) result: static middle-axis slices + lane concat.
    out_ref[...] = jnp.concatenate(
        [y3[:, l, :] for l in range(L)], axis=-1).astype(out_ref.dtype)


def self_attn(x, wq, bq, wk, bk, wv, bv, gamma, *, block_b=None):
    """x: (B, L, H) float32. Weights use torch.nn.Linear layouts: W (out,in), b (out,)."""
    B, L, H = x.shape

    if block_b is None:
        # Single grid step: one TensorCore on v5e/v6e, and plain "parallel" does not
        # shard over v7x's two TCs anyway, so extra steps are pure per-step overhead.
        block_b = B
    assert B % block_b == 0, "block_b must divide B"
    # Lane-dense 2-D output block: leading dim must be the full batch or a sublane
    # multiple to satisfy the (8, 128) tiling rule.
    assert block_b == B or block_b % 8 == 0, "block_b must be B or a multiple of 8"
    grid_b = B // block_b

    gamma2d = jnp.reshape(gamma, (1, 1)).astype(jnp.float32)
    # Pre-transpose nn.Linear weights once in the wrapper (y = x @ W.T + b) and fuse
    # Wq/Wk into a single (H, 2H) operand; V stays separate (computed post-softmax).
    wqkT = jnp.concatenate([wq.T, wk.T], axis=1)        # (H, 2H)
    bqk = jnp.concatenate([bq, bk]).reshape(1, 2 * H)   # (1, 2H)
    wvT = wv.T
    bv2 = bv.reshape(1, H)

    full2d = lambda i: (0, 0)

    # Advisory cost: QK fused + V projections + energy + out (each 2*L*H*H per batch
    # per matmul; 5 H*H-sized matmuls total), exp over (H, H) per batch, x/out traffic
    # plus resident weights (fetched once).
    cost = pl.CostEstimate(
        flops=int(B * 10 * L * H * H),
        transcendentals=int(B * H * H),
        bytes_accessed=int(2 * B * L * H * 4 + (3 * H * H + 3 * H) * 4 + 4),
    )

    out_dense = pl.pallas_call(
        _self_attn_kernel,
        out_shape=jax.ShapeDtypeStruct((B, L * H), x.dtype),
        grid_spec=pltpu.PrefetchScalarGridSpec(
            num_scalar_prefetch=0,
            grid=(grid_b,),
            in_specs=[
                pl.BlockSpec(memory_space=pltpu.MemorySpace.SMEM),            # gamma
                pl.BlockSpec((block_b, L, H), lambda i: (i, 0, 0)),           # x
                pl.BlockSpec((H, 2 * H), full2d), pl.BlockSpec((1, 2 * H), full2d),  # Wqk^T, bqk
                pl.BlockSpec((H, H), full2d), pl.BlockSpec((1, H), full2d),          # Wv^T, bv
            ],
            out_specs=pl.BlockSpec((block_b, L * H), lambda i: (i, 0)),
        ),
        compiler_params=pltpu.CompilerParams(
            dimension_semantics=("arbitrary",)),
        cost_estimate=cost,
    )(gamma2d, x, wqkT, bqk, wvT, bv2)

    # Free contiguous reshape back to the module's (B, L, H) layout.
    return out_dense.reshape(B, L, H)


def _reference(x, wq, bq, wk, bk, wv, bv, gamma):
    q = x @ wq.T + bq
    k = x @ wk.T + bk
    v = x @ wv.T + bv
    energy = jnp.einsum('blh,blg->bhg', q, k)          # q.permute(0,2,1) @ k
    attn = jax.nn.softmax(energy, axis=-1)
    out = jnp.einsum('bli,bji->blj', v, attn)          # v @ attn.permute(0,2,1)
    return gamma * out + x


if __name__ == "__main__":
    B, L, H = 8, 8, 32   # batch, max_length, attn_size (hidden)
    key = jax.random.PRNGKey(0)
    ks = jax.random.split(key, 7)
    x = jax.random.normal(ks[0], (B, L, H), jnp.float32)
    scale = 1.0 / np.sqrt(H)
    wq = jax.random.normal(ks[1], (H, H), jnp.float32) * scale
    bq = jax.random.normal(ks[2], (H,), jnp.float32) * 0.1
    wk = jax.random.normal(ks[3], (H, H), jnp.float32) * scale
    bk = jax.random.normal(ks[4], (H,), jnp.float32) * 0.1
    wv = jax.random.normal(ks[5], (H, H), jnp.float32) * scale
    bv = jax.random.normal(ks[6], (H,), jnp.float32) * 0.1
    # Module __init__ sets gamma = zeros(1); use a deterministic nonzero value here so
    # the attention path is actually exercised (gamma=0 would make out == x trivially).
    gamma = jnp.array([0.5], jnp.float32)

    out = self_attn(x, wq, bq, wk, bk, wv, bv, gamma)
    jax.block_until_ready(out)

    ref = _reference(x, wq, bq, wk, bk, wv, bv, gamma[0])
    np.testing.assert_allclose(np.asarray(out), np.asarray(ref), rtol=1e-5, atol=1e-5)
    print("KERNEL_OK")
</pallas_src>

<mosaic_0001>
module attributes {stable_mosaic.version = 11 : i64} {
  func.func @_self_attn_kernel(%arg0: i32, %arg1: memref<1x1xf32, #tpu.memory_space<smem>>, %arg2: memref<8x8x32xf32, #tpu.memory_space<vmem>>, %arg3: memref<32x64xf32, #tpu.memory_space<vmem>>, %arg4: memref<1x64xf32, #tpu.memory_space<vmem>>, %arg5: memref<32x32xf32, #tpu.memory_space<vmem>>, %arg6: memref<1x32xf32, #tpu.memory_space<vmem>>, %arg7: memref<8x256xf32, #tpu.memory_space<vmem>>) attributes {dimension_semantics = [#tpu.dimension_semantics<arbitrary>], iteration_bounds = array<i64: 1>, scalar_prefetch = 0 : i64, scratch_operands = 0 : i64, tpu.core_type = #tpu.core_type<tc>, window_params = [{transform_indices = @transform_0, window_bounds = array<i64: 1, 1>}, {transform_indices = @transform_1, window_bounds = array<i64: 8, 8, 32>}, {pipeline_mode = #tpu.pipeline_mode<synchronous>, transform_indices = @transform_2, window_bounds = array<i64: 32, 64>}, {pipeline_mode = #tpu.pipeline_mode<synchronous>, transform_indices = @transform_3, window_bounds = array<i64: 1, 64>}, {pipeline_mode = #tpu.pipeline_mode<synchronous>, transform_indices = @transform_4, window_bounds = array<i64: 32, 32>}, {pipeline_mode = #tpu.pipeline_mode<synchronous>, transform_indices = @transform_5, window_bounds = array<i64: 1, 32>}, {transform_indices = @transform_6, window_bounds = array<i64: 8, 256>}]} {
    %c0 = arith.constant 0 : index
    %c0_0 = arith.constant 0 : index
    %c0_1 = arith.constant 0 : index
    %0 = vector.load %arg2[%c0, %c0_0, %c0_1] : memref<8x8x32xf32, #tpu.memory_space<vmem>>, vector<8x8x32xf32>
    %1 = vector.shape_cast %0 : vector<8x8x32xf32> to vector<64x32xf32>
    %c0_2 = arith.constant 0 : index
    %c0_3 = arith.constant 0 : index
    %2 = vector.load %arg3[%c0_2, %c0_3] : memref<32x64xf32, #tpu.memory_space<vmem>>, vector<32x64xf32>
    %cst = arith.constant dense<0.000000e+00> : vector<64x64xf32>
    %3 = tpu.matmul %1, %2, %cst {dimension_numbers = #tpu.dot_dimension_numbers<[1], [0], [0], [1], [0, 0, 1, 1], [], []>} : vector<64x32xf32>, vector<32x64xf32>, vector<64x64xf32> -> vector<64x64xf32>
    %c0_4 = arith.constant 0 : index
    %c0_5 = arith.constant 0 : index
    %4 = vector.load %arg4[%c0_4, %c0_5] : memref<1x64xf32, #tpu.memory_space<vmem>>, vector<1x64xf32>
    %5 = vector.broadcast %4 : vector<1x64xf32> to vector<64x64xf32>
    %6 = arith.addf %3, %5 : vector<64x64xf32>
    %7 = vector.extract_strided_slice %6 {offsets = [0, 0], sizes = [64, 32], strides = [1, 1]} : vector<64x64xf32> to vector<64x32xf32>
    %8 = vector.shape_cast %7 : vector<64x32xf32> to vector<8x8x32xf32>
    %9 = vector.extract_strided_slice %6 {offsets = [0, 32], sizes = [64, 32], strides = [1, 1]} : vector<64x64xf32> to vector<64x32xf32>
    %10 = vector.shape_cast %9 : vector<64x32xf32> to vector<8x8x32xf32>
    "tpu.trace_start"() <{level = 10 : i32, message = "blh,blg->bhg"}> : () -> ()
    %cst_6 = arith.constant dense<0.000000e+00> : vector<8x32x32xf32>
    %11 = tpu.matmul %8, %10, %cst_6 {dimension_numbers = #tpu.dot_dimension_numbers<[1], [1], [2], [2], [0, 0, 0, 2, 1, 2], [0], [0]>} : vector<8x8x32xf32>, vector<8x8x32xf32>, vector<8x32x32xf32> -> vector<8x32x32xf32>
    "tpu.trace_stop"() : () -> ()
    %cst_7 = arith.constant dense<0xFF800000> : vector<8x32xf32>
    %12 = vector.multi_reduction <maximumf>, %11, %cst_7 [2] : vector<8x32x32xf32> to vector<8x32xf32>
    %13 = vector.shape_cast %12 : vector<8x32xf32> to vector<8x32x1xf32>
    %14 = vector.broadcast %13 : vector<8x32x1xf32> to vector<8x32x32xf32>
    %15 = arith.subf %11, %14 : vector<8x32x32xf32>
    %16 = math.exp %15 : vector<8x32x32xf32>
    %cst_8 = arith.constant dense<0.000000e+00> : vector<8x32xf32>
    %17 = vector.multi_reduction <add>, %16, %cst_8 [2] : vector<8x32x32xf32> to vector<8x32xf32>
    %18 = vector.shape_cast %17 : vector<8x32xf32> to vector<8x32x1xf32>
    %19 = vector.broadcast %18 : vector<8x32x1xf32> to vector<8x32x32xf32>
    %20 = arith.divf %16, %19 : vector<8x32x32xf32>
    %c0_9 = arith.constant 0 : index
    %c0_10 = arith.constant 0 : index
    %21 = vector.load %arg5[%c0_9, %c0_10] : memref<32x32xf32, #tpu.memory_space<vmem>>, vector<32x32xf32>
    %cst_11 = arith.constant dense<0.000000e+00> : vector<64x32xf32>
    %22 = tpu.matmul %1, %21, %cst_11 {dimension_numbers = #tpu.dot_dimension_numbers<[1], [0], [0], [1], [0, 0, 1, 1], [], []>} : vector<64x32xf32>, vector<32x32xf32>, vector<64x32xf32> -> vector<64x32xf32>
    %c0_12 = arith.constant 0 : index
    %c0_13 = arith.constant 0 : index
    %23 = vector.load %arg6[%c0_12, %c0_13] : memref<1x32xf32, #tpu.memory_space<vmem>>, vector<1x32xf32>
    %24 = vector.broadcast %23 : vector<1x32xf32> to vector<64x32xf32>
    %25 = arith.addf %22, %24 : vector<64x32xf32>
    %26 = vector.shape_cast %25 : vector<64x32xf32> to vector<8x8x32xf32>
    "tpu.trace_start"() <{level = 10 : i32, message = "bli,bji->blj"}> : () -> ()
    %cst_14 = arith.constant dense<0.000000e+00> : vector<8x8x32xf32>
    %27 = tpu.matmul %26, %20, %cst_14 {dimension_numbers = #tpu.dot_dimension_numbers<[2], [2], [1], [1], [0, 0, 0, 1, 1, 1], [0], [0]>} : vector<8x8x32xf32>, vector<8x32x32xf32>, vector<8x8x32xf32> -> vector<8x8x32xf32>
    "tpu.trace_stop"() : () -> ()
    %c0_15 = arith.constant 0 : index
    %c0_16 = arith.constant 0 : index
    %28 = memref.load %arg1[%c0_15, %c0_16] : memref<1x1xf32, #tpu.memory_space<smem>>
    %29 = vector.broadcast %28 : f32 to vector<8x8x32xf32>
    %30 = arith.mulf %29, %27 : vector<8x8x32xf32>
    %31 = arith.addf %30, %0 : vector<8x8x32xf32>
    %32 = vector.extract_strided_slice %31 {offsets = [0, 0, 0], sizes = [8, 1, 32], strides = [1, 1, 1]} : vector<8x8x32xf32> to vector<8x1x32xf32>
    %33 = vector.shape_cast %32 : vector<8x1x32xf32> to vector<8x32xf32>
    %34 = vector.extract_strided_slice %31 {offsets = [0, 1, 0], sizes = [8, 1, 32], strides = [1, 1, 1]} : vector<8x8x32xf32> to vector<8x1x32xf32>
    %35 = vector.shape_cast %34 : vector<8x1x32xf32> to vector<8x32xf32>
    %36 = vector.extract_strided_slice %31 {offsets = [0, 2, 0], sizes = [8, 1, 32], strides = [1, 1, 1]} : vector<8x8x32xf32> to vector<8x1x32xf32>
    %37 = vector.shape_cast %36 : vector<8x1x32xf32> to vector<8x32xf32>
    %38 = vector.extract_strided_slice %31 {offsets = [0, 3, 0], sizes = [8, 1, 32], strides = [1, 1, 1]} : vector<8x8x32xf32> to vector<8x1x32xf32>
    %39 = vector.shape_cast %38 : vector<8x1x32xf32> to vector<8x32xf32>
    %40 = vector.extract_strided_slice %31 {offsets = [0, 4, 0], sizes = [8, 1, 32], strides = [1, 1, 1]} : vector<8x8x32xf32> to vector<8x1x32xf32>
    %41 = vector.shape_cast %40 : vector<8x1x32xf32> to vector<8x32xf32>
    %42 = vector.extract_strided_slice %31 {offsets = [0, 5, 0], sizes = [8, 1, 32], strides = [1, 1, 1]} : vector<8x8x32xf32> to vector<8x1x32xf32>
    %43 = vector.shape_cast %42 : vector<8x1x32xf32> to vector<8x32xf32>
    %44 = vector.extract_strided_slice %31 {offsets = [0, 6, 0], sizes = [8, 1, 32], strides = [1, 1, 1]} : vector<8x8x32xf32> to vector<8x1x32xf32>
    %45 = vector.shape_cast %44 : vector<8x1x32xf32> to vector<8x32xf32>
    %46 = vector.extract_strided_slice %31 {offsets = [0, 7, 0], sizes = [8, 1, 32], strides = [1, 1, 1]} : vector<8x8x32xf32> to vector<8x1x32xf32>
    %47 = vector.shape_cast %46 : vector<8x1x32xf32> to vector<8x32xf32>
    %48 = tpu.concatenate %33, %35, %37, %39, %41, %43, %45, %47 in 1 : vector<8x32xf32>, vector<8x32xf32>, vector<8x32xf32>, vector<8x32xf32>, vector<8x32xf32>, vector<8x32xf32>, vector<8x32xf32>, vector<8x32xf32> -> vector<8x256xf32>
    %c0_17 = arith.constant 0 : index
    %c0_18 = arith.constant 0 : index
    %49 = vector.load %arg7[%c0_17, %c0_18] : memref<8x256xf32, #tpu.memory_space<vmem>>, vector<8x256xf32>
    tpu.vector_store %arg7[%c0_17, %c0_18], %48 {strides = array<i32>} : memref<8x256xf32, #tpu.memory_space<vmem>>, vector<8x256xf32>,
    return
  }
  func.func @transform_0(%arg0: i32) -> (i32, i32) {
    %c0_i32 = arith.constant 0 : i32
    %c0_i32_0 = arith.constant 0 : i32
    %c0_i32_1 = arith.constant 0 : i32
    return %c0_i32, %c0_i32_0 : i32, i32
  }
  func.func @transform_1(%arg0: i32) -> (i32, i32, i32) {
    %c0_i32 = arith.constant 0 : i32
    %c0_i32_0 = arith.constant 0 : i32
    %c0_i32_1 = arith.constant 0 : i32
    return %arg0, %c0_i32, %c0_i32_0 : i32, i32, i32
  }
  func.func @transform_2(%arg0: i32) -> (i32, i32) {
    %c0_i32 = arith.constant 0 : i32
    %c0_i32_0 = arith.constant 0 : i32
    %c0_i32_1 = arith.constant 0 : i32
    return %c0_i32, %c0_i32_0 : i32, i32
  }
  func.func @transform_3(%arg0: i32) -> (i32, i32) {
    %c0_i32 = arith.constant 0 : i32
    %c0_i32_0 = arith.constant 0 : i32
    %c0_i32_1 = arith.constant 0 : i32
    return %c0_i32, %c0_i32_0 : i32, i32
  }
  func.func @transform_4(%arg0: i32) -> (i32, i32) {
    %c0_i32 = arith.constant 0 : i32
    %c0_i32_0 = arith.constant 0 : i32
    %c0_i32_1 = arith.constant 0 : i32
    return %c0_i32, %c0_i32_0 : i32, i32
  }
  func.func @transform_5(%arg0: i32) -> (i32, i32) {
    %c0_i32 = arith.constant 0 : i32
    %c0_i32_0 = arith.constant 0 : i32
    %c0_i32_1 = arith.constant 0 : i32
    return %c0_i32, %c0_i32_0 : i32, i32
  }
  func.func @transform_6(%arg0: i32) -> (i32, i32) {
    %c0_i32 = arith.constant 0 : i32
    %c0_i32_0 = arith.constant 0 : i32
    return %arg0, %c0_i32 : i32, i32
  }
}

</mosaic_0001>

<llo_original>
// kernel: tpu_custom_call.1
$region0: #{tpu_custom_call.1}
  #allocation0 [shape = 'u32[]', space=smem, size = 0x4, offset = 0x4, fixed_abs, tag = 'smem constant byte address 0x4 - core index']
  #allocation1 [shape = 'u32[144,128]{1,0:T(1,128)}', space=vmem, size = 0x12000, scoped, tag = 'internal scratch']
  #allocation2 [shape = 'f32[1,1]{1,0:T(1,128)S(6)}', space=smem, size = 0x200, scoped, tag = 'scoped memory for tpu_custom_call.1']
  %s0 = inlined_call_operand.<no memory space> [shape: f32[1,1], index: 0, kind: input, shape index: {}]
  %s1 = inlined_call_operand.hbm [shape: f32[8,8,32], index: 1, kind: input, shape index: {}]
  %s2 = inlined_call_operand.hbm [shape: f32[32,64], index: 2, kind: input, shape index: {}]
  %s3 = inlined_call_operand.vmem [shape: f32[1,64], index: 3, kind: input, shape index: {}]
  %s4 = inlined_call_operand.hbm [shape: f32[32,32], index: 4, kind: input, shape index: {}]
  %s5 = inlined_call_operand.vmem [shape: f32[1,32], index: 5, kind: input, shape index: {}]
  %s6 = inlined_call_operand.hbm [shape: f32[8,256], index: 6, kind: output, shape index: {}]
  %s7 = sld [smem:[#allocation0]]
  $region46: #{tpu_custom_call.1} parent=0
    _
  %s9 = ssub.s32 1, %s7
  %s10 = scalar_select 0, %s9, %s7
  %11 = sst [smem:[#allocation2]] %s0
  $region1: #{tpu_custom_call.1} parent=0
    #allocation3 [shape = 'u8[32768]{0}', space=vmem, size = 0x8000, scoped, tag = 'input window, operand 1, single buffered']
    #allocation4 [shape = 's32[1]{0}', space=sflag, size = 0x4, scoped, tag = 'scoped memory for tpu_custom_call.1']
    #allocation5 [shape = 's32[1]{0}', space=sflag, size = 0x4, scoped, tag = 'scoped memory for tpu_custom_call.1']
    #allocation6 [shape = 'u8[16384]{0}', space=vmem, size = 0x4000, scoped, tag = 'input window, operand 2, single buffered']
    #allocation7 [shape = 's32[1]{0}', space=sflag, size = 0x4, scoped, tag = 'scoped memory for tpu_custom_call.1']
    #allocation8 [shape = 'u8[16384]{0}', space=vmem, size = 0x4000, scoped, tag = 'input window, operand 4, single buffered']
    #allocation9 [shape = 'u8[8192]{0}', space=vmem, size = 0x2000, scoped, tag = 'output window, operand 0, single buffered']
    %12 = vsyncpa [#allocation4], 0
    %13 = vsyncpa [#allocation7], 0
    %14 = vsyncpa [#allocation5], 0
    // Predicated region
    $region2: #{tpu_custom_call.1} parent=1 // pred_check
      _
    $region3: #{tpu_custom_call.1} parent=1 // pred_check_branch
      %16 = sbr.rel (0) target = $region5
    $region4: #{tpu_custom_call.1} parent=1 // pred_region
      _
    $region5: #{tpu_custom_call.1} parent=1 // pred_fallthru
      _
    // Predicated region
    $region6: #{tpu_custom_call.1} parent=1 // pred_check
      _
    $region7: #{tpu_custom_call.1} parent=1 // pred_check_branch
      %18 = sbr.rel (0) target = $region9
    $region8: #{tpu_custom_call.1} parent=1 // pred_region
      %s20 = ssub.s32 1024, 1024
      %21 = vsyncadd [#allocation4], %s20
      %s22 = sshll.u32 [#allocation3], 4
      %s23 = int_to_ptr.vmem [resolvable:$true] %s22
      %28 = dma.hbm_to_vmem [thread:$0]  %s1, 1024, %s23, [#allocation4], 128, 128, 8
    $region9: #{tpu_custom_call.1} parent=1 // pred_fallthru
      _
    // Predicated region
    $region10: #{tpu_custom_call.1} parent=1 // pred_check
      _
    $region11: #{tpu_custom_call.1} parent=1 // pred_check_branch
      %30 = sbr.rel (0) target = $region13
    $region12: #{tpu_custom_call.1} parent=1 // pred_region
      %s32 = ssub.s32 512, 512
      %33 = vsyncadd [#allocation7], %s32
      %s34 = sshll.u32 [#allocation6], 4
      %s35 = int_to_ptr.vmem [resolvable:$true] %s34
      %40 = dma.hbm_to_vmem [thread:$0]  %s2, 512, %s35, [#allocation7], 128, 128, 8
    $region13: #{tpu_custom_call.1} parent=1 // pred_fallthru
      _
    // Predicated region
    $region14: #{tpu_custom_call.1} parent=1 // pred_check
      _
    $region15: #{tpu_custom_call.1} parent=1 // pred_check_branch
      %42 = sbr.rel (0) target = $region17
    $region16: #{tpu_custom_call.1} parent=1 // pred_region
      _
    $region17: #{tpu_custom_call.1} parent=1 // pred_fallthru
      _
    // Predicated region
    $region18: #{tpu_custom_call.1} parent=1 // pred_check
      _
    $region19: #{tpu_custom_call.1} parent=1 // pred_check_branch
      %44 = sbr.rel (0) target = $region21
    $region20: #{tpu_custom_call.1} parent=1 // pred_region
      %s46 = ssub.s32 512, 512
      %47 = vsyncadd [#allocation7], %s46
      %s48 = sshll.u32 [#allocation8], 4
      %s49 = int_to_ptr.vmem [resolvable:$true] %s48
      %54 = dma.hbm_to_vmem [thread:$0]  %s4, 512, %s49, [#allocation7], 128, 128, 8
    $region21: #{tpu_custom_call.1} parent=1 // pred_fallthru
      _
    // Predicated region
    $region22: #{tpu_custom_call.1} parent=1 // pred_check
      _
    $region23: #{tpu_custom_call.1} parent=1 // pred_check_branch
      %56 = sbr.rel (0) target = $region25
    $region24: #{tpu_custom_call.1} parent=1 // pred_region
      _
    $region25: #{tpu_custom_call.1} parent=1 // pred_fallthru
      _
    // Predicated region
    $region26: #{tpu_custom_call.1} parent=1 // pred_check
      _
    $region27: #{tpu_custom_call.1} parent=1 // pred_check_branch
      %58 = sbr.rel (0) target = $region29
    $region28: #{tpu_custom_call.1} parent=1 // pred_region
      %59 = dma.done [#allocation4], 1024
    $region29: #{tpu_custom_call.1} parent=1 // pred_fallthru
      _
    // Predicated region
    $region30: #{tpu_custom_call.1} parent=1 // pred_check
      _
    $region31: #{tpu_custom_call.1} parent=1 // pred_check_branch
      %61 = sbr.rel (0) target = $region33
    $region32: #{tpu_custom_call.1} parent=1 // pred_region
      %62 = dma.done [#allocation7], 512
    $region33: #{tpu_custom_call.1} parent=1 // pred_fallthru
      _
    // Predicated region
    $region34: #{tpu_custom_call.1} parent=1 // pred_check
      _
    $region35: #{tpu_custom_call.1} parent=1 // pred_check_branch
      %64 = sbr.rel (0) target = $region37
    $region36: #{tpu_custom_call.1} parent=1 // pred_region
      %65 = dma.done [#allocation7], 512
    $region37: #{tpu_custom_call.1} parent=1 // pred_fallthru
      _
    %v66 = vld [vmem:[#allocation3] sm:$0xff]
    %v67 = vld [vmem:[#allocation3 + $0x8] sm:$0xff]
    %v68 = vld [vmem:[#allocation3 + $0x10] sm:$0xff]
    %v69 = vld [vmem:[#allocation3 + $0x18] sm:$0xff]
    %v70 = vld [vmem:[#allocation3 + $0x20] sm:$0xff]
    %v71 = vld [vmem:[#allocation3 + $0x28] sm:$0xff]
    %v72 = vld [vmem:[#allocation3 + $0x30] sm:$0xff]
    %v73 = vld [vmem:[#allocation3 + $0x38] sm:$0xff]
    %v74 = vld [vmem:[#allocation6] sm:$0xff]
    %v75 = vld [vmem:[#allocation6 + $0x8] sm:$0xff]
    %v76 = vld [vmem:[#allocation6 + $0x10] sm:$0xff]
    %v77 = vld [vmem:[#allocation6 + $0x18] sm:$0xff]
    %v78 = vld [vmem:[%s3] sm:$0x1]
    %v80 = vlaneseq
    %v81 = vshrl.u32 %v80, 7
    %v82 = vsub.s32 0, %v81
    %v83 = vrot.slane %v78, %v82
    %vm85 = vcmask 261120
    %v87 = vsel %vm85, %v66, 0
    %v90 = vsel %vm85, %v67, 0
    %v93 = vsel %vm85, %v68, 0
    %v96 = vsel %vm85, %v69, 0
    %v99 = vsel %vm85, %v70, 0
    %v102 = vsel %vm85, %v71, 0
    %v105 = vsel %vm85, %v72, 0
    %v108 = vsel %vm85, %v73, 0
    %110 = vmatprep.subr.mxu0 0.0
    %111 = vmatpush1.msra.mxu0 0.0
    %112 = vmatprep.subr.mxu0 0.0
    %113 = vmatpush1.msra.mxu0 0.0
    %114 = vmatprep.subr.mxu0 0.0
    %115 = vmatpush1.msra.mxu0 0.0
    %116 = vmatprep.subr.mxu0 0.0
    %117 = vmatpush1.msra.mxu0 0.0
    %118 = vmatprep.subr.mxu0 0.0
    %119 = vmatpush1.msra.mxu0 0.0
    %120 = vmatprep.subr.mxu0 0.0
    %121 = vmatpush1.msra.mxu0 0.0
    %122 = vmatprep.subr.mxu0 0.0
    %123 = vmatpush1.msra.mxu0 0.0
    %124 = vmatprep.subr.mxu0 0.0
    %125 = vmatpush1.msra.mxu0 0.0
    %126 = vmatprep.subr.mxu0 0.0
    %127 = vmatpush1.msra.mxu0 0.0
    %128 = vmatprep.subr.mxu0 0.0
    %129 = vmatpush1.msra.mxu0 0.0
    %130 = vmatprep.subr.mxu0 0.0
    %131 = vmatpush1.msra.mxu0 0.0
    %132 = vmatprep.subr.mxu0 0.0
    %133 = vmatpush1.msra.mxu0 0.0
    %134 = vmatprep.subr.mxu0 0.0
    %135 = vmatpush1.msra.mxu0 %v77
    %136 = vmatprep.subr.mxu0 0.0
    %137 = vmatpush1.msra.mxu0 %v76
    %138 = vmatprep.subr.mxu0 0.0
    %139 = vmatpush1.msra.mxu0 %v75
    %140 = vmatprep.subr.mxu0 0.0
    %141 = vmatpush1.msra.mxu0 %v74
    %142 = vmatprep.subr.mxu0 0.0
    %143 = vmatpush2.msra.mxu0 0.0
    %144 = vmatprep.subr.mxu0 0.0
    %145 = vmatpush2.msra.mxu0 0.0
    %146 = vmatprep.subr.mxu0 0.0
    %147 = vmatpush2.msra.mxu0 0.0
    %148 = vmatprep.subr.mxu0 0.0
    %149 = vmatpush2.msra.mxu0 0.0
    %150 = vmatprep.subr.mxu0 0.0
    %151 = vmatpush2.msra.mxu0 0.0
    %152 = vmatprep.subr.mxu0 0.0
    %153 = vmatpush2.msra.mxu0 0.0
    %154 = vmatprep.subr.mxu0 0.0
    %155 = vmatpush2.msra.mxu0 0.0
    %156 = vmatprep.subr.mxu0 0.0
    %157 = vmatpush2.msra.mxu0 0.0
    %158 = vmatprep.subr.mxu0 0.0
    %159 = vmatpush2.msra.mxu0 0.0
    %160 = vmatprep.subr.mxu0 0.0
    %161 = vmatpush2.msra.mxu0 0.0
    %162 = vmatprep.subr.mxu0 0.0
    %163 = vmatpush2.msra.mxu0 0.0
    %164 = vmatprep.subr.mxu0 0.0
    %165 = vmatpush2.msra.mxu0 0.0
    %166 = vmatprep.subr.mxu0 0.0
    %167 = vmatpush2.msra.mxu0 0.0
    %168 = vmatprep.subr.mxu0 0.0
    %169 = vmatpush2.msra.mxu0 0.0
    %170 = vmatprep.subr.mxu0 0.0
    %171 = vmatpush2.msra.mxu0 0.0
    %172 = vmatprep.subr.mxu0 0.0
    %173 = vmatpush2.msra.mxu0 0.0
    %174 = vmatprep.mubr.f32.mxu0 0.0
    %175 = vmatmul.mubr.f32.gmra.mxu0 %v87
    %v176 = vpop.f32.mrf.mxu0
    %v177 = vadd.f32 %v83, %v176
    %v178 = vpop.f32.mrf.mxu0
    %179 = vmatprep.mubr.f32.mxu0 0.0
    %180 = vmatmul.mubr.f32.gmra.mxu0 %v90
    %v181 = vpop.f32.mrf.mxu0
    %v182 = vadd.f32 %v83, %v181
    %v183 = vpop.f32.mrf.mxu0
    %184 = vmatprep.mubr.f32.mxu0 0.0
    %185 = vmatmul.mubr.f32.gmra.mxu0 %v93
    %v186 = vpop.f32.mrf.mxu0
    %v187 = vadd.f32 %v83, %v186
    %v188 = vpop.f32.mrf.mxu0
    %189 = vmatprep.mubr.f32.mxu0 0.0
    %190 = vmatmul.mubr.f32.gmra.mxu0 %v96
    %v191 = vpop.f32.mrf.mxu0
    %v192 = vadd.f32 %v83, %v191
    %v193 = vpop.f32.mrf.mxu0
    %194 = vmatprep.mubr.f32.mxu0 0.0
    %195 = vmatmul.mubr.f32.gmra.mxu0 %v99
    %v196 = vpop.f32.mrf.mxu0
    %v197 = vadd.f32 %v83, %v196
    %v198 = vpop.f32.mrf.mxu0
    %199 = vmatprep.mubr.f32.mxu0 0.0
    %200 = vmatmul.mubr.f32.gmra.mxu0 %v102
    %v201 = vpop.f32.mrf.mxu0
    %v202 = vadd.f32 %v83, %v201
    %v203 = vpop.f32.mrf.mxu0
    %204 = vmatprep.mubr.f32.mxu0 0.0
    %205 = vmatmul.mubr.f32.gmra.mxu0 %v105
    %v206 = vpop.f32.mrf.mxu0
    %v207 = vadd.f32 %v83, %v206
    %v208 = vpop.f32.mrf.mxu0
    %209 = vmatprep.mubr.f32.mxu0 0.0
    %210 = vmatmul.mubr.f32.gmra.mxu0 %v108
    %v211 = vpop.f32.mrf.mxu0
    %v212 = vadd.f32 %v83, %v211
    %v213 = vpop.f32.mrf.mxu0
    %214 = vdwg.mxu0
    %215 = vxpose.xlu0.b32.start [1/16] %v177, 128
    %216 = vxpose.xlu0.b32.cont [2/16] 0.0, 128
    %217 = vxpose.xlu0.b32.cont [3/16] 0.0, 128
    %218 = vxpose.xlu0.b32.cont [4/16] 0.0, 128
    %219 = vxpose.xlu0.b32.cont [5/16] 0.0, 128
    %220 = vxpose.xlu0.b32.cont [6/16] 0.0, 128
    %221 = vxpose.xlu0.b32.cont [7/16] 0.0, 128
    %222 = vxpose.xlu0.b32.cont [8/16] 0.0, 128
    %223 = vxpose.xlu0.b32.cont [9/16] 0.0, 128
    %224 = vxpose.xlu0.b32.cont [10/16] 0.0, 128
    %225 = vxpose.xlu0.b32.cont [11/16] 0.0, 128
    %226 = vxpose.xlu0.b32.cont [12/16] 0.0, 128
    %227 = vxpose.xlu0.b32.cont [13/16] 0.0, 128
    %228 = vxpose.xlu0.b32.cont [14/16] 0.0, 128
    %229 = vxpose.xlu0.b32.cont [15/16] 0.0, 128
    %230 = vxpose.xlu0.b32.end [16/16] 0.0, 128
    %v231 = vpop.trf.xlu0
    %v232 = vpop.trf.xlu0
    %v233 = vpop.trf.xlu0
    %v234 = vpop.trf.xlu0
    %v235 = vpop.trf.xlu0
    %v236 = vpop.trf.xlu0
    %v237 = vpop.trf.xlu0
    %v238 = vpop.trf.xlu0
    %v239 = vpop.trf.xlu0
    %v240 = vpop.trf.xlu0
    %v241 = vpop.trf.xlu0
    %v242 = vpop.trf.xlu0
    %v243 = vpop.trf.xlu0
    %v244 = vpop.trf.xlu0
    %v245 = vpop.trf.xlu0
    %v246 = vpop.trf.xlu0
    %248 = vrot.lane.b32.xlu0 %v177, 96
    %v249 = vpop.permute.xlu0 %248
    %vm251 = vcmask 64512
    %v253 = vsel %vm251, %v231, 0
    %v256 = vsel %vm251, %v232, 0
    %v259 = vsel %vm251, %v233, 0
    %v262 = vsel %vm251, %v234, 0
    %264 = vmatprep.subr.mxu0 0.0
    %265 = vmatpush1.msra.mxu0 0.0
    %266 = vmatprep.subr.mxu0 0.0
    %267 = vmatpush1.msra.mxu0 0.0
    %268 = vmatprep.subr.mxu0 0.0
    %269 = vmatpush1.msra.mxu0 0.0
    %270 = vmatprep.subr.mxu0 0.0
    %271 = vmatpush1.msra.mxu0 0.0
    %272 = vmatprep.subr.mxu0 0.0
    %273 = vmatpush1.msra.mxu0 0.0
    %274 = vmatprep.subr.mxu0 0.0
    %275 = vmatpush1.msra.mxu0 0.0
    %276 = vmatprep.subr.mxu0 0.0
    %277 = vmatpush1.msra.mxu0 0.0
    %278 = vmatprep.subr.mxu0 0.0
    %279 = vmatpush1.msra.mxu0 0.0
    %280 = vmatprep.subr.mxu0 0.0
    %281 = vmatpush1.msra.mxu0 0.0
    %282 = vmatprep.subr.mxu0 0.0
    %283 = vmatpush1.msra.mxu0 0.0
    %284 = vmatprep.subr.mxu0 0.0
    %285 = vmatpush1.msra.mxu0 0.0
    %286 = vmatprep.subr.mxu0 0.0
    %287 = vmatpush1.msra.mxu0 0.0
    %288 = vmatprep.subr.mxu0 0.0
    %289 = vmatpush1.msra.mxu0 0.0
    %290 = vmatprep.subr.mxu0 0.0
    %291 = vmatpush1.msra.mxu0 0.0
    %292 = vmatprep.subr.mxu0 0.0
    %293 = vmatpush1.msra.mxu0 0.0
    %294 = vmatprep.subr.mxu0 0.0
    %295 = vmatpush1.msra.mxu0 %v249
    %296 = vmatprep.subr.mxu0 0.0
    %297 = vmatpush2.msra.mxu0 0.0
    %298 = vmatprep.subr.mxu0 0.0
    %299 = vmatpush2.msra.mxu0 0.0
    %300 = vmatprep.subr.mxu0 0.0
    %301 = vmatpush2.msra.mxu0 0.0
    %302 = vmatprep.subr.mxu0 0.0
    %303 = vmatpush2.msra.mxu0 0.0
    %304 = vmatprep.subr.mxu0 0.0
    %305 = vmatpush2.msra.mxu0 0.0
    %306 = vmatprep.subr.mxu0 0.0
    %307 = vmatpush2.msra.mxu0 0.0
    %308 = vmatprep.subr.mxu0 0.0
    %309 = vmatpush2.msra.mxu0 0.0
    %310 = vmatprep.subr.mxu0 0.0
    %311 = vmatpush2.msra.mxu0 0.0
    %312 = vmatprep.subr.mxu0 0.0
    %313 = vmatpush2.msra.mxu0 0.0
    %314 = vmatprep.subr.mxu0 0.0
    %315 = vmatpush2.msra.mxu0 0.0
    %316 = vmatprep.subr.mxu0 0.0
    %317 = vmatpush2.msra.mxu0 0.0
    %318 = vmatprep.subr.mxu0 0.0
    %319 = vmatpush2.msra.mxu0 0.0
    %320 = vmatprep.subr.mxu0 0.0
    %321 = vmatpush2.msra.mxu0 0.0
    %322 = vmatprep.subr.mxu0 0.0
    %323 = vmatpush2.msra.mxu0 0.0
    %324 = vmatprep.subr.mxu0 0.0
    %325 = vmatpush2.msra.mxu0 0.0
    %326 = vmatprep.subr.mxu0 0.0
    %327 = vmatpush2.msra.mxu0 0.0
    %328 = vmatprep.mubr.f32.mxu0 0.0
    %329 = vmatmul.mubr.f32.gmra.mxu0 %v253
    %v330 = vpop.f32.mrf.mxu0
    %v331 = vadd.f32 0.0, %v330
    %v332 = vpop.f32.mrf.mxu0
    %333 = vmatprep.mubr.f32.mxu0 0.0
    %334 = vmatmul.mubr.f32.gmra.mxu0 %v256
    %v335 = vpop.f32.mrf.mxu0
    %v336 = vadd.f32 0.0, %v335
    %v337 = vpop.f32.mrf.mxu0
    %338 = vmatprep.mubr.f32.mxu0 0.0
    %339 = vmatmul.mubr.f32.gmra.mxu0 %v259
    %v340 = vpop.f32.mrf.mxu0
    %v341 = vadd.f32 0.0, %v340
    %v342 = vpop.f32.mrf.mxu0
    %343 = vmatprep.mubr.f32.mxu0 0.0
    %344 = vmatmul.mubr.f32.gmra.mxu0 %v262
    %v345 = vpop.f32.mrf.mxu0
    %v346 = vadd.f32 0.0, %v345
    %v347 = vpop.f32.mrf.mxu0
    %348 = vdwg.mxu0
    %349 = vxpose.xlu0.b32.start [1/16] %v182, 128
    %350 = vxpose.xlu0.b32.cont [2/16] 0.0, 128
    %351 = vxpose.xlu0.b32.cont [3/16] 0.0, 128
    %352 = vxpose.xlu0.b32.cont [4/16] 0.0, 128
    %353 = vxpose.xlu0.b32.cont [5/16] 0.0, 128
    %354 = vxpose.xlu0.b32.cont [6/16] 0.0, 128
    %355 = vxpose.xlu0.b32.cont [7/16] 0.0, 128
    %356 = vxpose.xlu0.b32.cont [8/16] 0.0, 128
    %357 = vxpose.xlu0.b32.cont [9/16] 0.0, 128
    %358 = vxpose.xlu0.b32.cont [10/16] 0.0, 128
    %359 = vxpose.xlu0.b32.cont [11/16] 0.0, 128
    %360 = vxpose.xlu0.b32.cont [12/16] 0.0, 128
    %361 = vxpose.xlu0.b32.cont [13/16] 0.0, 128
    %362 = vxpose.xlu0.b32.cont [14/16] 0.0, 128
    %363 = vxpose.xlu0.b32.cont [15/16] 0.0, 128
    %364 = vxpose.xlu0.b32.end [16/16] 0.0, 128
    %v365 = vpop.trf.xlu0
    %v366 = vpop.trf.xlu0
    %v367 = vpop.trf.xlu0
    %v368 = vpop.trf.xlu0
    %v369 = vpop.trf.xlu0
    %v370 = vpop.trf.xlu0
    %v371 = vpop.trf.xlu0
    %v372 = vpop.trf.xlu0
    %v373 = vpop.trf.xlu0
    %v374 = vpop.trf.xlu0
    %v375 = vpop.trf.xlu0
    %v376 = vpop.trf.xlu0
    %v377 = vpop.trf.xlu0
    %v378 = vpop.trf.xlu0
    %v379 = vpop.trf.xlu0
    %v380 = vpop.trf.xlu0
    %382 = vrot.lane.b32.xlu0 %v182, 96
    %v383 = vpop.permute.xlu0 %382
    %v386 = vsel %vm251, %v365, 0
    %v389 = vsel %vm251, %v366, 0
    %v392 = vsel %vm251, %v367, 0
    %v395 = vsel %vm251, %v368, 0
    %397 = vmatprep.subr.mxu0 0.0
    %398 = vmatpush1.msra.mxu0 0.0
    %399 = vmatprep.subr.mxu0 0.0
    %400 = vmatpush1.msra.mxu0 0.0
    %401 = vmatprep.subr.mxu0 0.0
    %402 = vmatpush1.msra.mxu0 0.0
    %403 = vmatprep.subr.mxu0 0.0
    %404 = vmatpush1.msra.mxu0 0.0
    %405 = vmatprep.subr.mxu0 0.0
    %406 = vmatpush1.msra.mxu0 0.0
    %407 = vmatprep.subr.mxu0 0.0
    %408 = vmatpush1.msra.mxu0 0.0
    %409 = vmatprep.subr.mxu0 0.0
    %410 = vmatpush1.msra.mxu0 0.0
    %411 = vmatprep.subr.mxu0 0.0
    %412 = vmatpush1.msra.mxu0 0.0
    %413 = vmatprep.subr.mxu0 0.0
    %414 = vmatpush1.msra.mxu0 0.0
    %415 = vmatprep.subr.mxu0 0.0
    %416 = vmatpush1.msra.mxu0 0.0
    %417 = vmatprep.subr.mxu0 0.0
    %418 = vmatpush1.msra.mxu0 0.0
    %419 = vmatprep.subr.mxu0 0.0
    %420 = vmatpush1.msra.mxu0 0.0
    %421 = vmatprep.subr.mxu0 0.0
    %422 = vmatpush1.msra.mxu0 0.0
    %423 = vmatprep.subr.mxu0 0.0
    %424 = vmatpush1.msra.mxu0 0.0
    %425 = vmatprep.subr.mxu0 0.0
    %426 = vmatpush1.msra.mxu0 0.0
    %427 = vmatprep.subr.mxu0 0.0
    %428 = vmatpush1.msra.mxu0 %v383
    %429 = vmatprep.subr.mxu0 0.0
    %430 = vmatpush2.msra.mxu0 0.0
    %431 = vmatprep.subr.mxu0 0.0
    %432 = vmatpush2.msra.mxu0 0.0
    %433 = vmatprep.subr.mxu0 0.0
    %434 = vmatpush2.msra.mxu0 0.0
    %435 = vmatprep.subr.mxu0 0.0
    %436 = vmatpush2.msra.mxu0 0.0
    %437 = vmatprep.subr.mxu0 0.0
    %438 = vmatpush2.msra.mxu0 0.0
    %439 = vmatprep.subr.mxu0 0.0
    %440 = vmatpush2.msra.mxu0 0.0
    %441 = vmatprep.subr.mxu0 0.0
    %442 = vmatpush2.msra.mxu0 0.0
    %443 = vmatprep.subr.mxu0 0.0
    %444 = vmatpush2.msra.mxu0 0.0
    %445 = vmatprep.subr.mxu0 0.0
    %446 = vmatpush2.msra.mxu0 0.0
    %447 = vmatprep.subr.mxu0 0.0
    %448 = vmatpush2.msra.mxu0 0.0
    %449 = vmatprep.subr.mxu0 0.0
    %450 = vmatpush2.msra.mxu0 0.0
    %451 = vmatprep.subr.mxu0 0.0
    %452 = vmatpush2.msra.mxu0 0.0
    %453 = vmatprep.subr.mxu0 0.0
    %454 = vmatpush2.msra.mxu0 0.0
    %455 = vmatprep.subr.mxu0 0.0
    %456 = vmatpush2.msra.mxu0 0.0
    %457 = vmatprep.subr.mxu0 0.0
    %458 = vmatpush2.msra.mxu0 0.0
    %459 = vmatprep.subr.mxu0 0.0
    %460 = vmatpush2.msra.mxu0 0.0
    %461 = vmatprep.mubr.f32.mxu0 0.0
    %462 = vmatmul.mubr.f32.gmra.mxu0 %v386
    %v463 = vpop.f32.mrf.mxu0
    %v464 = vadd.f32 0.0, %v463
    %v465 = vpop.f32.mrf.mxu0
    %466 = vmatprep.mubr.f32.mxu0 0.0
    %467 = vmatmul.mubr.f32.gmra.mxu0 %v389
    %v468 = vpop.f32.mrf.mxu0
    %v469 = vadd.f32 0.0, %v468
    %v470 = vpop.f32.mrf.mxu0
    %471 = vmatprep.mubr.f32.mxu0 0.0
    %472 = vmatmul.mubr.f32.gmra.mxu0 %v392
    %v473 = vpop.f32.mrf.mxu0
    %v474 = vadd.f32 0.0, %v473
    %v475 = vpop.f32.mrf.mxu0
    %476 = vmatprep.mubr.f32.mxu0 0.0
    %477 = vmatmul.mubr.f32.gmra.mxu0 %v395
    %v478 = vpop.f32.mrf.mxu0
    %v479 = vadd.f32 0.0, %v478
    %v480 = vpop.f32.mrf.mxu0
    %481 = vdwg.mxu0
    %482 = vxpose.xlu0.b32.start [1/16] %v187, 128
    %483 = vxpose.xlu0.b32.cont [2/16] 0.0, 128
    %484 = vxpose.xlu0.b32.cont [3/16] 0.0, 128
    %485 = vxpose.xlu0.b32.cont [4/16] 0.0, 128
    %486 = vxpose.xlu0.b32.cont [5/16] 0.0, 128
    %487 = vxpose.xlu0.b32.cont [6/16] 0.0, 128
    %488 = vxpose.xlu0.b32.cont [7/16] 0.0, 128
    %489 = vxpose.xlu0.b32.cont [8/16] 0.0, 128
    %490 = vxpose.xlu0.b32.cont [9/16] 0.0, 128
    %491 = vxpose.xlu0.b32.cont [10/16] 0.0, 128
    %492 = vxpose.xlu0.b32.cont [11/16] 0.0, 128
    %493 = vxpose.xlu0.b32.cont [12/16] 0.0, 128
    %494 = vxpose.xlu0.b32.cont [13/16] 0.0, 128
    %495 = vxpose.xlu0.b32.cont [14/16] 0.0, 128
    %496 = vxpose.xlu0.b32.cont [15/16] 0.0, 128
    %497 = vxpose.xlu0.b32.end [16/16] 0.0, 128
    %v498 = vpop.trf.xlu0
    %v499 = vpop.trf.xlu0
    %v500 = vpop.trf.xlu0
    %v501 = vpop.trf.xlu0
    %v502 = vpop.trf.xlu0
    %v503 = vpop.trf.xlu0
    %v504 = vpop.trf.xlu0
    %v505 = vpop.trf.xlu0
    %v506 = vpop.trf.xlu0
    %v507 = vpop.trf.xlu0
    %v508 = vpop.trf.xlu0
    %v509 = vpop.trf.xlu0
    %v510 = vpop.trf.xlu0
    %v511 = vpop.trf.xlu0
    %v512 = vpop.trf.xlu0
    %v513 = vpop.trf.xlu0
    %515 = vrot.lane.b32.xlu0 %v187, 96
    %v516 = vpop.permute.xlu0 %515
    %v519 = vsel %vm251, %v498, 0
    %v522 = vsel %vm251, %v499, 0
    %v525 = vsel %vm251, %v500, 0
    %v528 = vsel %vm251, %v501, 0
    %530 = vmatprep.subr.mxu0 0.0
    %531 = vmatpush1.msra.mxu0 0.0
    %532 = vmatprep.subr.mxu0 0.0
    %533 = vmatpush1.msra.mxu0 0.0
    %534 = vmatprep.subr.mxu0 0.0
    %535 = vmatpush1.msra.mxu0 0.0
    %536 = vmatprep.subr.mxu0 0.0
    %537 = vmatpush1.msra.mxu0 0.0
    %538 = vmatprep.subr.mxu0 0.0
    %539 = vmatpush1.msra.mxu0 0.0
    %540 = vmatprep.subr.mxu0 0.0
    %541 = vmatpush1.msra.mxu0 0.0
    %542 = vmatprep.subr.mxu0 0.0
    %543 = vmatpush1.msra.mxu0 0.0
    %544 = vmatprep.subr.mxu0 0.0
    %545 = vmatpush1.msra.mxu0 0.0
    %546 = vmatprep.subr.mxu0 0.0
    %547 = vmatpush1.msra.mxu0 0.0
    %548 = vmatprep.subr.mxu0 0.0
    %549 = vmatpush1.msra.mxu0 0.0
    %550 = vmatprep.subr.mxu0 0.0
    %551 = vmatpush1.msra.mxu0 0.0
    %552 = vmatprep.subr.mxu0 0.0
    %553 = vmatpush1.msra.mxu0 0.0
    %554 = vmatprep.subr.mxu0 0.0
    %555 = vmatpush1.msra.mxu0 0.0
    %556 = vmatprep.subr.mxu0 0.0
    %557 = vmatpush1.msra.mxu0 0.0
    %558 = vmatprep.subr.mxu0 0.0
    %559 = vmatpush1.msra.mxu0 0.0
    %560 = vmatprep.subr.mxu0 0.0
    %561 = vmatpush1.msra.mxu0 %v516
    %562 = vmatprep.subr.mxu0 0.0
    %563 = vmatpush2.msra.mxu0 0.0
    %564 = vmatprep.subr.mxu0 0.0
    %565 = vmatpush2.msra.mxu0 0.0
    %566 = vmatprep.subr.mxu0 0.0
    %567 = vmatpush2.msra.mxu0 0.0
    %568 = vmatprep.subr.mxu0 0.0
    %569 = vmatpush2.msra.mxu0 0.0
    %570 = vmatprep.subr.mxu0 0.0
    %571 = vmatpush2.msra.mxu0 0.0
    %572 = vmatprep.subr.mxu0 0.0
    %573 = vmatpush2.msra.mxu0 0.0
    %574 = vmatprep.subr.mxu0 0.0
    %575 = vmatpush2.msra.mxu0 0.0
    %576 = vmatprep.subr.mxu0 0.0
    %577 = vmatpush2.msra.mxu0 0.0
    %578 = vmatprep.subr.mxu0 0.0
    %579 = vmatpush2.msra.mxu0 0.0
    %580 = vmatprep.subr.mxu0 0.0
    %581 = vmatpush2.msra.mxu0 0.0
    %582 = vmatprep.subr.mxu0 0.0
    %583 = vmatpush2.msra.mxu0 0.0
    %584 = vmatprep.subr.mxu0 0.0
    %585 = vmatpush2.msra.mxu0 0.0
    %586 = vmatprep.subr.mxu0 0.0
    %587 = vmatpush2.msra.mxu0 0.0
    %588 = vmatprep.subr.mxu0 0.0
    %589 = vmatpush2.msra.mxu0 0.0
    %590 = vmatprep.subr.mxu0 0.0
    %591 = vmatpush2.msra.mxu0 0.0
    %592 = vmatprep.subr.mxu0 0.0
    %593 = vmatpush2.msra.mxu0 0.0
    %594 = vmatprep.mubr.f32.mxu0 0.0
    %595 = vmatmul.mubr.f32.gmra.mxu0 %v519
    %v596 = vpop.f32.mrf.mxu0
    %v597 = vadd.f32 0.0, %v596
    %v598 = vpop.f32.mrf.mxu0
    %599 = vmatprep.mubr.f32.mxu0 0.0
    %600 = vmatmul.mubr.f32.gmra.mxu0 %v522
    %v601 = vpop.f32.mrf.mxu0
    %v602 = vadd.f32 0.0, %v601
    %v603 = vpop.f32.mrf.mxu0
    %604 = vmatprep.mubr.f32.mxu0 0.0
    %605 = vmatmul.mubr.f32.gmra.mxu0 %v525
    %v606 = vpop.f32.mrf.mxu0
    %v607 = vadd.f32 0.0, %v606
    %v608 = vpop.f32.mrf.mxu0
    %609 = vmatprep.mubr.f32.mxu0 0.0
    %610 = vmatmul.mubr.f32.gmra.mxu0 %v528
    %v611 = vpop.f32.mrf.mxu0
    %v612 = vadd.f32 0.0, %v611
    %v613 = vpop.f32.mrf.mxu0
    %614 = vdwg.mxu0
    %615 = vxpose.xlu0.b32.start [1/16] %v192, 128
    %616 = vxpose.xlu0.b32.cont [2/16] 0.0, 128
    %617 = vxpose.xlu0.b32.cont [3/16] 0.0, 128
    %618 = vxpose.xlu0.b32.cont [4/16] 0.0, 128
    %619 = vxpose.xlu0.b32.cont [5/16] 0.0, 128
    %620 = vxpose.xlu0.b32.cont [6/16] 0.0, 128
    %621 = vxpose.xlu0.b32.cont [7/16] 0.0, 128
    %622 = vxpose.xlu0.b32.cont [8/16] 0.0, 128
    %623 = vxpose.xlu0.b32.cont [9/16] 0.0, 128
    %624 = vxpose.xlu0.b32.cont [10/16] 0.0, 128
    %625 = vxpose.xlu0.b32.cont [11/16] 0.0, 128
    %626 = vxpose.xlu0.b32.cont [12/16] 0.0, 128
    %627 = vxpose.xlu0.b32.cont [13/16] 0.0, 128
    %628 = vxpose.xlu0.b32.cont [14/16] 0.0, 128
    %629 = vxpose.xlu0.b32.cont [15/16] 0.0, 128
    %630 = vxpose.xlu0.b32.end [16/16] 0.0, 128
    %v631 = vpop.trf.xlu0
    %v632 = vpop.trf.xlu0
    %v633 = vpop.trf.xlu0
    %v634 = vpop.trf.xlu0
    %v635 = vpop.trf.xlu0
    %v636 = vpop.trf.xlu0
    %v637 = vpop.trf.xlu0
    %v638 = vpop.trf.xlu0
    %v639 = vpop.trf.xlu0
    %v640 = vpop.trf.xlu0
    %v641 = vpop.trf.xlu0
    %v642 = vpop.trf.xlu0
    %v643 = vpop.trf.xlu0
    %v644 = vpop.trf.xlu0
    %v645 = vpop.trf.xlu0
    %v646 = vpop.trf.xlu0
    %648 = vrot.lane.b32.xlu0 %v192, 96
    %v649 = vpop.permute.xlu0 %648
    %v652 = vsel %vm251, %v631, 0
    %v655 = vsel %vm251, %v632, 0
    %v658 = vsel %vm251, %v633, 0
    %v661 = vsel %vm251, %v634, 0
    %663 = vmatprep.subr.mxu0 0.0
    %664 = vmatpush1.msra.mxu0 0.0
    %665 = vmatprep.subr.mxu0 0.0
    %666 = vmatpush1.msra.mxu0 0.0
    %667 = vmatprep.subr.mxu0 0.0
    %668 = vmatpush1.msra.mxu0 0.0
    %669 = vmatprep.subr.mxu0 0.0
    %670 = vmatpush1.msra.mxu0 0.0
    %671 = vmatprep.subr.mxu0 0.0
    %672 = vmatpush1.msra.mxu0 0.0
    %673 = vmatprep.subr.mxu0 0.0
    %674 = vmatpush1.msra.mxu0 0.0
    %675 = vmatprep.subr.mxu0 0.0
    %676 = vmatpush1.msra.mxu0 0.0
    %677 = vmatprep.subr.mxu0 0.0
    %678 = vmatpush1.msra.mxu0 0.0
    %679 = vmatprep.subr.mxu0 0.0
    %680 = vmatpush1.msra.mxu0 0.0
    %681 = vmatprep.subr.mxu0 0.0
    %682 = vmatpush1.msra.mxu0 0.0
    %683 = vmatprep.subr.mxu0 0.0
    %684 = vmatpush1.msra.mxu0 0.0
    %685 = vmatprep.subr.mxu0 0.0
    %686 = vmatpush1.msra.mxu0 0.0
    %687 = vmatprep.subr.mxu0 0.0
    %688 = vmatpush1.msra.mxu0 0.0
    %689 = vmatprep.subr.mxu0 0.0
    %690 = vmatpush1.msra.mxu0 0.0
    %691 = vmatprep.subr.mxu0 0.0
    %692 = vmatpush1.msra.mxu0 0.0
    %693 = vmatprep.subr.mxu0 0.0
    %694 = vmatpush1.msra.mxu0 %v649
    %695 = vmatprep.subr.mxu0 0.0
    %696 = vmatpush2.msra.mxu0 0.0
    %697 = vmatprep.subr.mxu0 0.0
    %698 = vmatpush2.msra.mxu0 0.0
    %699 = vmatprep.subr.mxu0 0.0
    %700 = vmatpush2.msra.mxu0 0.0
    %701 = vmatprep.subr.mxu0 0.0
    %702 = vmatpush2.msra.mxu0 0.0
    %703 = vmatprep.subr.mxu0 0.0
    %704 = vmatpush2.msra.mxu0 0.0
    %705 = vmatprep.subr.mxu0 0.0
    %706 = vmatpush2.msra.mxu0 0.0
    %707 = vmatprep.subr.mxu0 0.0
    %708 = vmatpush2.msra.mxu0 0.0
    %709 = vmatprep.subr.mxu0 0.0
    %710 = vmatpush2.msra.mxu0 0.0
    %711 = vmatprep.subr.mxu0 0.0
    %712 = vmatpush2.msra.mxu0 0.0
    %713 = vmatprep.subr.mxu0 0.0
    %714 = vmatpush2.msra.mxu0 0.0
    %715 = vmatprep.subr.mxu0 0.0
    %716 = vmatpush2.msra.mxu0 0.0
    %717 = vmatprep.subr.mxu0 0.0
    %718 = vmatpush2.msra.mxu0 0.0
    %719 = vmatprep.subr.mxu0 0.0
    %720 = vmatpush2.msra.mxu0 0.0
    %721 = vmatprep.subr.mxu0 0.0
    %722 = vmatpush2.msra.mxu0 0.0
    %723 = vmatprep.subr.mxu0 0.0
    %724 = vmatpush2.msra.mxu0 0.0
    %725 = vmatprep.subr.mxu0 0.0
    %726 = vmatpush2.msra.mxu0 0.0
    %727 = vmatprep.mubr.f32.mxu0 0.0
    %728 = vmatmul.mubr.f32.gmra.mxu0 %v652
    %v729 = vpop.f32.mrf.mxu0
    %v730 = vadd.f32 0.0, %v729
    %v731 = vpop.f32.mrf.mxu0
    %732 = vmatprep.mubr.f32.mxu0 0.0
    %733 = vmatmul.mubr.f32.gmra.mxu0 %v655
    %v734 = vpop.f32.mrf.mxu0
    %v735 = vadd.f32 0.0, %v734
    %v736 = vpop.f32.mrf.mxu0
    %737 = vmatprep.mubr.f32.mxu0 0.0
    %738 = vmatmul.mubr.f32.gmra.mxu0 %v658
    %v739 = vpop.f32.mrf.mxu0
    %v740 = vadd.f32 0.0, %v739
    %v741 = vpop.f32.mrf.mxu0
    %742 = vmatprep.mubr.f32.mxu0 0.0
    %743 = vmatmul.mubr.f32.gmra.mxu0 %v661
    %v744 = vpop.f32.mrf.mxu0
    %v745 = vadd.f32 0.0, %v744
    %v746 = vpop.f32.mrf.mxu0
    %747 = vdwg.mxu0
    %748 = vxpose.xlu0.b32.start [1/16] %v197, 128
    %749 = vxpose.xlu0.b32.cont [2/16] 0.0, 128
    %750 = vxpose.xlu0.b32.cont [3/16] 0.0, 128
    %751 = vxpose.xlu0.b32.cont [4/16] 0.0, 128
    %752 = vxpose.xlu0.b32.cont [5/16] 0.0, 128
    %753 = vxpose.xlu0.b32.cont [6/16] 0.0, 128
    %754 = vxpose.xlu0.b32.cont [7/16] 0.0, 128
    %755 = vxpose.xlu0.b32.cont [8/16] 0.0, 128
    %756 = vxpose.xlu0.b32.cont [9/16] 0.0, 128
    %757 = vxpose.xlu0.b32.cont [10/16] 0.0, 128
    %758 = vxpose.xlu0.b32.cont [11/16] 0.0, 128
    %759 = vxpose.xlu0.b32.cont [12/16] 0.0, 128
    %760 = vxpose.xlu0.b32.cont [13/16] 0.0, 128
    %761 = vxpose.xlu0.b32.cont [14/16] 0.0, 128
    %762 = vxpose.xlu0.b32.cont [15/16] 0.0, 128
    %763 = vxpose.xlu0.b32.end [16/16] 0.0, 128
    %v764 = vpop.trf.xlu0
    %v765 = vpop.trf.xlu0
    %v766 = vpop.trf.xlu0
    %v767 = vpop.trf.xlu0
    %v768 = vpop.trf.xlu0
    %v769 = vpop.trf.xlu0
    %v770 = vpop.trf.xlu0
    %v771 = vpop.trf.xlu0
    %v772 = vpop.trf.xlu0
    %v773 = vpop.trf.xlu0
    %v774 = vpop.trf.xlu0
    %v775 = vpop.trf.xlu0
    %v776 = vpop.trf.xlu0
    %v777 = vpop.trf.xlu0
    %v778 = vpop.trf.xlu0
    %v779 = vpop.trf.xlu0
    %781 = vrot.lane.b32.xlu0 %v197, 96
    %v782 = vpop.permute.xlu0 %781
    %v785 = vsel %vm251, %v764, 0
    %v788 = vsel %vm251, %v765, 0
    %v791 = vsel %vm251, %v766, 0
    %v794 = vsel %vm251, %v767, 0
    %796 = vmatprep.subr.mxu0 0.0
    %797 = vmatpush1.msra.mxu0 0.0
    %798 = vmatprep.subr.mxu0 0.0
    %799 = vmatpush1.msra.mxu0 0.0
    %800 = vmatprep.subr.mxu0 0.0
    %801 = vmatpush1.msra.mxu0 0.0
    %802 = vmatprep.subr.mxu0 0.0
    %803 = vmatpush1.msra.mxu0 0.0
    %804 = vmatprep.subr.mxu0 0.0
    %805 = vmatpush1.msra.mxu0 0.0
    %806 = vmatprep.subr.mxu0 0.0
    %807 = vmatpush1.msra.mxu0 0.0
    %808 = vmatprep.subr.mxu0 0.0
    %809 = vmatpush1.msra.mxu0 0.0
    %810 = vmatprep.subr.mxu0 0.0
    %811 = vmatpush1.msra.mxu0 0.0
    %812 = vmatprep.subr.mxu0 0.0
    %813 = vmatpush1.msra.mxu0 0.0
    %814 = vmatprep.subr.mxu0 0.0
    %815 = vmatpush1.msra.mxu0 0.0
    %816 = vmatprep.subr.mxu0 0.0
    %817 = vmatpush1.msra.mxu0 0.0
    %818 = vmatprep.subr.mxu0 0.0
    %819 = vmatpush1.msra.mxu0 0.0
    %820 = vmatprep.subr.mxu0 0.0
    %821 = vmatpush1.msra.mxu0 0.0
    %822 = vmatprep.subr.mxu0 0.0
    %823 = vmatpush1.msra.mxu0 0.0
    %824 = vmatprep.subr.mxu0 0.0
    %825 = vmatpush1.msra.mxu0 0.0
    %826 = vmatprep.subr.mxu0 0.0
    %827 = vmatpush1.msra.mxu0 %v782
    %828 = vmatprep.subr.mxu0 0.0
    %829 = vmatpush2.msra.mxu0 0.0
    %830 = vmatprep.subr.mxu0 0.0
    %831 = vmatpush2.msra.mxu0 0.0
    %832 = vmatprep.subr.mxu0 0.0
    %833 = vmatpush2.msra.mxu0 0.0
    %834 = vmatprep.subr.mxu0 0.0
    %835 = vmatpush2.msra.mxu0 0.0
    %836 = vmatprep.subr.mxu0 0.0
    %837 = vmatpush2.msra.mxu0 0.0
    %838 = vmatprep.subr.mxu0 0.0
    %839 = vmatpush2.msra.mxu0 0.0
    %840 = vmatprep.subr.mxu0 0.0
    %841 = vmatpush2.msra.mxu0 0.0
    %842 = vmatprep.subr.mxu0 0.0
    %843 = vmatpush2.msra.mxu0 0.0
    %844 = vmatprep.subr.mxu0 0.0
    %845 = vmatpush2.msra.mxu0 0.0
    %846 = vmatprep.subr.mxu0 0.0
    %847 = vmatpush2.msra.mxu0 0.0
    %848 = vmatprep.subr.mxu0 0.0
    %849 = vmatpush2.msra.mxu0 0.0
    %850 = vmatprep.subr.mxu0 0.0
    %851 = vmatpush2.msra.mxu0 0.0
    %852 = vmatprep.subr.mxu0 0.0
    %853 = vmatpush2.msra.mxu0 0.0
    %854 = vmatprep.subr.mxu0 0.0
    %855 = vmatpush2.msra.mxu0 0.0
    %856 = vmatprep.subr.mxu0 0.0
    %857 = vmatpush2.msra.mxu0 0.0
    %858 = vmatprep.subr.mxu0 0.0
    %859 = vmatpush2.msra.mxu0 0.0
    %860 = vmatprep.mubr.f32.mxu0 0.0
    %861 = vmatmul.mubr.f32.gmra.mxu0 %v785
    %v862 = vpop.f32.mrf.mxu0
    %v863 = vadd.f32 0.0, %v862
    %v864 = vpop.f32.mrf.mxu0
    %865 = vmatprep.mubr.f32.mxu0 0.0
    %866 = vmatmul.mubr.f32.gmra.mxu0 %v788
    %v867 = vpop.f32.mrf.mxu0
    %v868 = vadd.f32 0.0, %v867
    %v869 = vpop.f32.mrf.mxu0
    %870 = vmatprep.mubr.f32.mxu0 0.0
    %871 = vmatmul.mubr.f32.gmra.mxu0 %v791
    %v872 = vpop.f32.mrf.mxu0
    %v873 = vadd.f32 0.0, %v872
    %v874 = vpop.f32.mrf.mxu0
    %875 = vmatprep.mubr.f32.mxu0 0.0
    %876 = vmatmul.mubr.f32.gmra.mxu0 %v794
    %v877 = vpop.f32.mrf.mxu0
    %v878 = vadd.f32 0.0, %v877
    %v879 = vpop.f32.mrf.mxu0
    %880 = vdwg.mxu0
    %881 = vxpose.xlu0.b32.start [1/16] %v202, 128
    %882 = vxpose.xlu0.b32.cont [2/16] 0.0, 128
    %883 = vxpose.xlu0.b32.cont [3/16] 0.0, 128
    %884 = vxpose.xlu0.b32.cont [4/16] 0.0, 128
    %885 = vxpose.xlu0.b32.cont [5/16] 0.0, 128
    %886 = vxpose.xlu0.b32.cont [6/16] 0.0, 128
    %887 = vxpose.xlu0.b32.cont [7/16] 0.0, 128
    %888 = vxpose.xlu0.b32.cont [8/16] 0.0, 128
    %889 = vxpose.xlu0.b32.cont [9/16] 0.0, 128
    %890 = vxpose.xlu0.b32.cont [10/16] 0.0, 128
    %891 = vxpose.xlu0.b32.cont [11/16] 0.0, 128
    %892 = vxpose.xlu0.b32.cont [12/16] 0.0, 128
    %893 = vxpose.xlu0.b32.cont [13/16] 0.0, 128
    %894 = vxpose.xlu0.b32.cont [14/16] 0.0, 128
    %895 = vxpose.xlu0.b32.cont [15/16] 0.0, 128
    %896 = vxpose.xlu0.b32.end [16/16] 0.0, 128
    %v897 = vpop.trf.xlu0
    %v898 = vpop.trf.xlu0
    %v899 = vpop.trf.xlu0
    %v900 = vpop.trf.xlu0
    %v901 = vpop.trf.xlu0
    %v902 = vpop.trf.xlu0
    %v903 = vpop.trf.xlu0
    %v904 = vpop.trf.xlu0
    %v905 = vpop.trf.xlu0
    %v906 = vpop.trf.xlu0
    %v907 = vpop.trf.xlu0
    %v908 = vpop.trf.xlu0
    %v909 = vpop.trf.xlu0
    %v910 = vpop.trf.xlu0
    %v911 = vpop.trf.xlu0
    %v912 = vpop.trf.xlu0
    %914 = vrot.lane.b32.xlu0 %v202, 96
    %v915 = vpop.permute.xlu0 %914
    %v918 = vsel %vm251, %v897, 0
    %v921 = vsel %vm251, %v898, 0
    %v924 = vsel %vm251, %v899, 0
    %v927 = vsel %vm251, %v900, 0
    %929 = vmatprep.subr.mxu0 0.0
    %930 = vmatpush1.msra.mxu0 0.0
    %931 = vmatprep.subr.mxu0 0.0
    %932 = vmatpush1.msra.mxu0 0.0
    %933 = vmatprep.subr.mxu0 0.0
    %934 = vmatpush1.msra.mxu0 0.0
    %935 = vmatprep.subr.mxu0 0.0
    %936 = vmatpush1.msra.mxu0 0.0
    %937 = vmatprep.subr.mxu0 0.0
    %938 = vmatpush1.msra.mxu0 0.0
    %939 = vmatprep.subr.mxu0 0.0
    %940 = vmatpush1.msra.mxu0 0.0
    %941 = vmatprep.subr.mxu0 0.0
    %942 = vmatpush1.msra.mxu0 0.0
    %943 = vmatprep.subr.mxu0 0.0
    %944 = vmatpush1.msra.mxu0 0.0
    %945 = vmatprep.subr.mxu0 0.0
    %946 = vmatpush1.msra.mxu0 0.0
    %947 = vmatprep.subr.mxu0 0.0
    %948 = vmatpush1.msra.mxu0 0.0
    %949 = vmatprep.subr.mxu0 0.0
    %950 = vmatpush1.msra.mxu0 0.0
    %951 = vmatprep.subr.mxu0 0.0
    %952 = vmatpush1.msra.mxu0 0.0
    %953 = vmatprep.subr.mxu0 0.0
    %954 = vmatpush1.msra.mxu0 0.0
    %955 = vmatprep.subr.mxu0 0.0
    %956 = vmatpush1.msra.mxu0 0.0
    %957 = vmatprep.subr.mxu0 0.0
    %958 = vmatpush1.msra.mxu0 0.0
    %959 = vmatprep.subr.mxu0 0.0
    %960 = vmatpush1.msra.mxu0 %v915
    %961 = vmatprep.subr.mxu0 0.0
    %962 = vmatpush2.msra.mxu0 0.0
    %963 = vmatprep.subr.mxu0 0.0
    %964 = vmatpush2.msra.mxu0 0.0
    %965 = vmatprep.subr.mxu0 0.0
    %966 = vmatpush2.msra.mxu0 0.0
    %967 = vmatprep.subr.mxu0 0.0
    %968 = vmatpush2.msra.mxu0 0.0
    %969 = vmatprep.subr.mxu0 0.0
    %970 = vmatpush2.msra.mxu0 0.0
    %971 = vmatprep.subr.mxu0 0.0
    %972 = vmatpush2.msra.mxu0 0.0
    %973 = vmatprep.subr.mxu0 0.0
    %974 = vmatpush2.msra.mxu0 0.0
    %975 = vmatprep.subr.mxu0 0.0
    %976 = vmatpush2.msra.mxu0 0.0
    %977 = vmatprep.subr.mxu0 0.0
    %978 = vmatpush2.msra.mxu0 0.0
    %979 = vmatprep.subr.mxu0 0.0
    %980 = vmatpush2.msra.mxu0 0.0
    %981 = vmatprep.subr.mxu0 0.0
    %982 = vmatpush2.msra.mxu0 0.0
    %983 = vmatprep.subr.mxu0 0.0
    %984 = vmatpush2.msra.mxu0 0.0
    %985 = vmatprep.subr.mxu0 0.0
    %986 = vmatpush2.msra.mxu0 0.0
    %987 = vmatprep.subr.mxu0 0.0
    %988 = vmatpush2.msra.mxu0 0.0
    %989 = vmatprep.subr.mxu0 0.0
    %990 = vmatpush2.msra.mxu0 0.0
    %991 = vmatprep.subr.mxu0 0.0
    %992 = vmatpush2.msra.mxu0 0.0
    %993 = vmatprep.mubr.f32.mxu0 0.0
    %994 = vmatmul.mubr.f32.gmra.mxu0 %v918
    %v995 = vpop.f32.mrf.mxu0
    %v996 = vadd.f32 0.0, %v995
    %v997 = vpop.f32.mrf.mxu0
    %998 = vmatprep.mubr.f32.mxu0 0.0
    %999 = vmatmul.mubr.f32.gmra.mxu0 %v921
    %v1000 = vpop.f32.mrf.mxu0
    %v1001 = vadd.f32 0.0, %v1000
    %v1002 = vpop.f32.mrf.mxu0
    %1003 = vmatprep.mubr.f32.mxu0 0.0
    %1004 = vmatmul.mubr.f32.gmra.mxu0 %v924
    %v1005 = vpop.f32.mrf.mxu0
    %v1006 = vadd.f32 0.0, %v1005
    %v1007 = vpop.f32.mrf.mxu0
    %1008 = vmatprep.mubr.f32.mxu0 0.0
    %1009 = vmatmul.mubr.f32.gmra.mxu0 %v927
    %v1010 = vpop.f32.mrf.mxu0
    %v1011 = vadd.f32 0.0, %v1010
    %v1012 = vpop.f32.mrf.mxu0
    %1013 = vdwg.mxu0
    %1014 = vxpose.xlu0.b32.start [1/16] %v207, 128
    %1015 = vxpose.xlu0.b32.cont [2/16] 0.0, 128
    %1016 = vxpose.xlu0.b32.cont [3/16] 0.0, 128
    %1017 = vxpose.xlu0.b32.cont [4/16] 0.0, 128
    %1018 = vxpose.xlu0.b32.cont [5/16] 0.0, 128
    %1019 = vxpose.xlu0.b32.cont [6/16] 0.0, 128
    %1020 = vxpose.xlu0.b32.cont [7/16] 0.0, 128
    %1021 = vxpose.xlu0.b32.cont [8/16] 0.0, 128
    %1022 = vxpose.xlu0.b32.cont [9/16] 0.0, 128
    %1023 = vxpose.xlu0.b32.cont [10/16] 0.0, 128
    %1024 = vxpose.xlu0.b32.cont [11/16] 0.0, 128
    %1025 = vxpose.xlu0.b32.cont [12/16] 0.0, 128
    %1026 = vxpose.xlu0.b32.cont [13/16] 0.0, 128
    %1027 = vxpose.xlu0.b32.cont [14/16] 0.0, 128
    %1028 = vxpose.xlu0.b32.cont [15/16] 0.0, 128
    %1029 = vxpose.xlu0.b32.end [16/16] 0.0, 128
    %v1030 = vpop.trf.xlu0
    %v1031 = vpop.trf.xlu0
    %v1032 = vpop.trf.xlu0
    %v1033 = vpop.trf.xlu0
    %v1034 = vpop.trf.xlu0
    %v1035 = vpop.trf.xlu0
    %v1036 = vpop.trf.xlu0
    %v1037 = vpop.trf.xlu0
    %v1038 = vpop.trf.xlu0
    %v1039 = vpop.trf.xlu0
    %v1040 = vpop.trf.xlu0
    %v1041 = vpop.trf.xlu0
    %v1042 = vpop.trf.xlu0
    %v1043 = vpop.trf.xlu0
    %v1044 = vpop.trf.xlu0
    %v1045 = vpop.trf.xlu0
    %1047 = vrot.lane.b32.xlu0 %v207, 96
    %v1048 = vpop.permute.xlu0 %1047
    %v1051 = vsel %vm251, %v1030, 0
    %v1054 = vsel %vm251, %v1031, 0
    %v1057 = vsel %vm251, %v1032, 0
    %v1060 = vsel %vm251, %v1033, 0
    %1062 = vmatprep.subr.mxu0 0.0
    %1063 = vmatpush1.msra.mxu0 0.0
    %1064 = vmatprep.subr.mxu0 0.0
    %1065 = vmatpush1.msra.mxu0 0.0
    %1066 = vmatprep.subr.mxu0 0.0
    %1067 = vmatpush1.msra.mxu0 0.0
    %1068 = vmatprep.subr.mxu0 0.0
    %1069 = vmatpush1.msra.mxu0 0.0
    %1070 = vmatprep.subr.mxu0 0.0
    %1071 = vmatpush1.msra.mxu0 0.0
    %1072 = vmatprep.subr.mxu0 0.0
    %1073 = vmatpush1.msra.mxu0 0.0
    %1074 = vmatprep.subr.mxu0 0.0
    %1075 = vmatpush1.msra.mxu0 0.0
    %1076 = vmatprep.subr.mxu0 0.0
    %1077 = vmatpush1.msra.mxu0 0.0
    %1078 = vmatprep.subr.mxu0 0.0
    %1079 = vmatpush1.msra.mxu0 0.0
    %1080 = vmatprep.subr.mxu0 0.0
    %1081 = vmatpush1.msra.mxu0 0.0
    %1082 = vmatprep.subr.mxu0 0.0
    %1083 = vmatpush1.msra.mxu0 0.0
    %1084 = vmatprep.subr.mxu0 0.0
    %1085 = vmatpush1.msra.mxu0 0.0
    %1086 = vmatprep.subr.mxu0 0.0
    %1087 = vmatpush1.msra.mxu0 0.0
    %1088 = vmatprep.subr.mxu0 0.0
    %1089 = vmatpush1.msra.mxu0 0.0
    %1090 = vmatprep.subr.mxu0 0.0
    %1091 = vmatpush1.msra.mxu0 0.0
    %1092 = vmatprep.subr.mxu0 0.0
    %1093 = vmatpush1.msra.mxu0 %v1048
    %1094 = vmatprep.subr.mxu0 0.0
    %1095 = vmatpush2.msra.mxu0 0.0
    %1096 = vmatprep.subr.mxu0 0.0
    %1097 = vmatpush2.msra.mxu0 0.0
    %1098 = vmatprep.subr.mxu0 0.0
    %1099 = vmatpush2.msra.mxu0 0.0
    %1100 = vmatprep.subr.mxu0 0.0
    %1101 = vmatpush2.msra.mxu0 0.0
    %1102 = vmatprep.subr.mxu0 0.0
    %1103 = vmatpush2.msra.mxu0 0.0
    %1104 = vmatprep.subr.mxu0 0.0
    %1105 = vmatpush2.msra.mxu0 0.0
    %1106 = vmatprep.subr.mxu0 0.0
    %1107 = vmatpush2.msra.mxu0 0.0
    %1108 = vmatprep.subr.mxu0 0.0
    %1109 = vmatpush2.msra.mxu0 0.0
    %1110 = vmatprep.subr.mxu0 0.0
    %1111 = vmatpush2.msra.mxu0 0.0
    %1112 = vmatprep.subr.mxu0 0.0
    %1113 = vmatpush2.msra.mxu0 0.0
    %1114 = vmatprep.subr.mxu0 0.0
    %1115 = vmatpush2.msra.mxu0 0.0
    %1116 = vmatprep.subr.mxu0 0.0
    %1117 = vmatpush2.msra.mxu0 0.0
    %1118 = vmatprep.subr.mxu0 0.0
    %1119 = vmatpush2.msra.mxu0 0.0
    %1120 = vmatprep.subr.mxu0 0.0
    %1121 = vmatpush2.msra.mxu0 0.0
    %1122 = vmatprep.subr.mxu0 0.0
    %1123 = vmatpush2.msra.mxu0 0.0
    %1124 = vmatprep.subr.mxu0 0.0
    %1125 = vmatpush2.msra.mxu0 0.0
    %1126 = vmatprep.mubr.f32.mxu0 0.0
    %1127 = vmatmul.mubr.f32.gmra.mxu0 %v1051
    %v1128 = vpop.f32.mrf.mxu0
    %v1129 = vadd.f32 0.0, %v1128
    %v1130 = vpop.f32.mrf.mxu0
    %1131 = vmatprep.mubr.f32.mxu0 0.0
    %1132 = vmatmul.mubr.f32.gmra.mxu0 %v1054
    %v1133 = vpop.f32.mrf.mxu0
    %v1134 = vadd.f32 0.0, %v1133
    %v1135 = vpop.f32.mrf.mxu0
    %1136 = vmatprep.mubr.f32.mxu0 0.0
    %1137 = vmatmul.mubr.f32.gmra.mxu0 %v1057
    %v1138 = vpop.f32.mrf.mxu0
    %v1139 = vadd.f32 0.0, %v1138
    %v1140 = vpop.f32.mrf.mxu0
    %1141 = vmatprep.mubr.f32.mxu0 0.0
    %1142 = vmatmul.mubr.f32.gmra.mxu0 %v1060
    %v1143 = vpop.f32.mrf.mxu0
    %v1144 = vadd.f32 0.0, %v1143
    %v1145 = vpop.f32.mrf.mxu0
    %1146 = vdwg.mxu0
    %1147 = vxpose.xlu0.b32.start [1/16] %v212, 128
    %1148 = vxpose.xlu0.b32.cont [2/16] 0.0, 128
    %1149 = vxpose.xlu0.b32.cont [3/16] 0.0, 128
    %1150 = vxpose.xlu0.b32.cont [4/16] 0.0, 128
    %1151 = vxpose.xlu0.b32.cont [5/16] 0.0, 128
    %1152 = vxpose.xlu0.b32.cont [6/16] 0.0, 128
    %1153 = vxpose.xlu0.b32.cont [7/16] 0.0, 128
    %1154 = vxpose.xlu0.b32.cont [8/16] 0.0, 128
    %1155 = vxpose.xlu0.b32.cont [9/16] 0.0, 128
    %1156 = vxpose.xlu0.b32.cont [10/16] 0.0, 128
    %1157 = vxpose.xlu0.b32.cont [11/16] 0.0, 128
    %1158 = vxpose.xlu0.b32.cont [12/16] 0.0, 128
    %1159 = vxpose.xlu0.b32.cont [13/16] 0.0, 128
    %1160 = vxpose.xlu0.b32.cont [14/16] 0.0, 128
    %1161 = vxpose.xlu0.b32.cont [15/16] 0.0, 128
    %1162 = vxpose.xlu0.b32.end [16/16] 0.0, 128
    %v1163 = vpop.trf.xlu0
    %v1164 = vpop.trf.xlu0
    %v1165 = vpop.trf.xlu0
    %v1166 = vpop.trf.xlu0
    %v1167 = vpop.trf.xlu0
    %v1168 = vpop.trf.xlu0
    %v1169 = vpop.trf.xlu0
    %v1170 = vpop.trf.xlu0
    %v1171 = vpop.trf.xlu0
    %v1172 = vpop.trf.xlu0
    %v1173 = vpop.trf.xlu0
    %v1174 = vpop.trf.xlu0
    %v1175 = vpop.trf.xlu0
    %v1176 = vpop.trf.xlu0
    %v1177 = vpop.trf.xlu0
    %v1178 = vpop.trf.xlu0
    %1180 = vrot.lane.b32.xlu0 %v212, 96
    %v1181 = vpop.permute.xlu0 %1180
    %v1184 = vsel %vm251, %v1163, 0
    %v1187 = vsel %vm251, %v1164, 0
    %v1190 = vsel %vm251, %v1165, 0
    %v1193 = vsel %vm251, %v1166, 0
    %1195 = vmatprep.subr.mxu0 0.0
    %1196 = vmatpush1.msra.mxu0 0.0
    %1197 = vmatprep.subr.mxu0 0.0
    %1198 = vmatpush1.msra.mxu0 0.0
    %1199 = vmatprep.subr.mxu0 0.0
    %1200 = vmatpush1.msra.mxu0 0.0
    %1201 = vmatprep.subr.mxu0 0.0
    %1202 = vmatpush1.msra.mxu0 0.0
    %1203 = vmatprep.subr.mxu0 0.0
    %1204 = vmatpush1.msra.mxu0 0.0
    %1205 = vmatprep.subr.mxu0 0.0
    %1206 = vmatpush1.msra.mxu0 0.0
    %1207 = vmatprep.subr.mxu0 0.0
    %1208 = vmatpush1.msra.mxu0 0.0
    %1209 = vmatprep.subr.mxu0 0.0
    %1210 = vmatpush1.msra.mxu0 0.0
    %1211 = vmatprep.subr.mxu0 0.0
    %1212 = vmatpush1.msra.mxu0 0.0
    %1213 = vmatprep.subr.mxu0 0.0
    %1214 = vmatpush1.msra.mxu0 0.0
    %1215 = vmatprep.subr.mxu0 0.0
    %1216 = vmatpush1.msra.mxu0 0.0
    %1217 = vmatprep.subr.mxu0 0.0
    %1218 = vmatpush1.msra.mxu0 0.0
    %1219 = vmatprep.subr.mxu0 0.0
    %1220 = vmatpush1.msra.mxu0 0.0
    %1221 = vmatprep.subr.mxu0 0.0
    %1222 = vmatpush1.msra.mxu0 0.0
    %1223 = vmatprep.subr.mxu0 0.0
    %1224 = vmatpush1.msra.mxu0 0.0
    %1225 = vmatprep.subr.mxu0 0.0
    %1226 = vmatpush1.msra.mxu0 %v1181
    %1227 = vmatprep.subr.mxu0 0.0
    %1228 = vmatpush2.msra.mxu0 0.0
    %1229 = vmatprep.subr.mxu0 0.0
    %1230 = vmatpush2.msra.mxu0 0.0
    %1231 = vmatprep.subr.mxu0 0.0
    %1232 = vmatpush2.msra.mxu0 0.0
    %1233 = vmatprep.subr.mxu0 0.0
    %1234 = vmatpush2.msra.mxu0 0.0
    %1235 = vmatprep.subr.mxu0 0.0
    %1236 = vmatpush2.msra.mxu0 0.0
    %1237 = vmatprep.subr.mxu0 0.0
    %1238 = vmatpush2.msra.mxu0 0.0
    %1239 = vmatprep.subr.mxu0 0.0
    %1240 = vmatpush2.msra.mxu0 0.0
    %1241 = vmatprep.subr.mxu0 0.0
    %1242 = vmatpush2.msra.mxu0 0.0
    %1243 = vmatprep.subr.mxu0 0.0
    %1244 = vmatpush2.msra.mxu0 0.0
    %1245 = vmatprep.subr.mxu0 0.0
    %1246 = vmatpush2.msra.mxu0 0.0
    %1247 = vmatprep.subr.mxu0 0.0
    %1248 = vmatpush2.msra.mxu0 0.0
    %1249 = vmatprep.subr.mxu0 0.0
    %1250 = vmatpush2.msra.mxu0 0.0
    %1251 = vmatprep.subr.mxu0 0.0
    %1252 = vmatpush2.msra.mxu0 0.0
    %1253 = vmatprep.subr.mxu0 0.0
    %1254 = vmatpush2.msra.mxu0 0.0
    %1255 = vmatprep.subr.mxu0 0.0
    %1256 = vmatpush2.msra.mxu0 0.0
    %1257 = vmatprep.subr.mxu0 0.0
    %1258 = vmatpush2.msra.mxu0 0.0
    %1259 = vmatprep.mubr.f32.mxu0 0.0
    %1260 = vmatmul.mubr.f32.gmra.mxu0 %v1184
    %v1261 = vpop.f32.mrf.mxu0
    %v1262 = vadd.f32 0.0, %v1261
    %v1263 = vpop.f32.mrf.mxu0
    %1264 = vmatprep.mubr.f32.mxu0 0.0
    %1265 = vmatmul.mubr.f32.gmra.mxu0 %v1187
    %v1266 = vpop.f32.mrf.mxu0
    %v1267 = vadd.f32 0.0, %v1266
    %v1268 = vpop.f32.mrf.mxu0
    %1269 = vmatprep.mubr.f32.mxu0 0.0
    %1270 = vmatmul.mubr.f32.gmra.mxu0 %v1190
    %v1271 = vpop.f32.mrf.mxu0
    %v1272 = vadd.f32 0.0, %v1271
    %v1273 = vpop.f32.mrf.mxu0
    %1274 = vmatprep.mubr.f32.mxu0 0.0
    %1275 = vmatmul.mubr.f32.gmra.mxu0 %v1193
    %v1276 = vpop.f32.mrf.mxu0
    %v1277 = vadd.f32 0.0, %v1276
    %v1278 = vpop.f32.mrf.mxu0
    %1279 = vdwg.mxu0
    %v1280 = vsel %vm85, %v331, -inf
    %1281 = vmax.xlane.f32.xlu0 %v1280
    %v1282 = vpop.xlane.xlu0 %1281
    %v1283 = vsel %vm85, %v336, -inf
    %1284 = vmax.xlane.f32.xlu0 %v1283
    %v1285 = vpop.xlane.xlu0 %1284
    %v1286 = vsel %vm85, %v341, -inf
    %1287 = vmax.xlane.f32.xlu0 %v1286
    %v1288 = vpop.xlane.xlu0 %1287
    %v1289 = vsel %vm85, %v346, -inf
    %1290 = vmax.xlane.f32.xlu0 %v1289
    %v1291 = vpop.xlane.xlu0 %1290
    %v1292 = vsel %vm85, %v464, -inf
    %1293 = vmax.xlane.f32.xlu0 %v1292
    %v1294 = vpop.xlane.xlu0 %1293
    %v1295 = vsel %vm85, %v469, -inf
    %1296 = vmax.xlane.f32.xlu0 %v1295
    %v1297 = vpop.xlane.xlu0 %1296
    %v1298 = vsel %vm85, %v474, -inf
    %1299 = vmax.xlane.f32.xlu0 %v1298
    %v1300 = vpop.xlane.xlu0 %1299
    %v1301 = vsel %vm85, %v479, -inf
    %1302 = vmax.xlane.f32.xlu0 %v1301
    %v1303 = vpop.xlane.xlu0 %1302
    %v1304 = vsel %vm85, %v597, -inf
    %1305 = vmax.xlane.f32.xlu0 %v1304
    %v1306 = vpop.xlane.xlu0 %1305
    %v1307 = vsel %vm85, %v602, -inf
    %1308 = vmax.xlane.f32.xlu0 %v1307
    %v1309 = vpop.xlane.xlu0 %1308
    %v1310 = vsel %vm85, %v607, -inf
    %1311 = vmax.xlane.f32.xlu0 %v1310
    %v1312 = vpop.xlane.xlu0 %1311
    %v1313 = vsel %vm85, %v612, -inf
    %1314 = vmax.xlane.f32.xlu0 %v1313
    %v1315 = vpop.xlane.xlu0 %1314
    %v1316 = vsel %vm85, %v730, -inf
    %1317 = vmax.xlane.f32.xlu0 %v1316
    %v1318 = vpop.xlane.xlu0 %1317
    %v1319 = vsel %vm85, %v735, -inf
    %1320 = vmax.xlane.f32.xlu0 %v1319
    %v1321 = vpop.xlane.xlu0 %1320
    %v1322 = vsel %vm85, %v740, -inf
    %1323 = vmax.xlane.f32.xlu0 %v1322
    %v1324 = vpop.xlane.xlu0 %1323
    %v1325 = vsel %vm85, %v745, -inf
    %1326 = vmax.xlane.f32.xlu0 %v1325
    %v1327 = vpop.xlane.xlu0 %1326
    %v1328 = vsel %vm85, %v863, -inf
    %1329 = vmax.xlane.f32.xlu0 %v1328
    %v1330 = vpop.xlane.xlu0 %1329
    %v1331 = vsel %vm85, %v868, -inf
    %1332 = vmax.xlane.f32.xlu0 %v1331
    %v1333 = vpop.xlane.xlu0 %1332
    %v1334 = vsel %vm85, %v873, -inf
    %1335 = vmax.xlane.f32.xlu0 %v1334
    %v1336 = vpop.xlane.xlu0 %1335
    %v1337 = vsel %vm85, %v878, -inf
    %1338 = vmax.xlane.f32.xlu0 %v1337
    %v1339 = vpop.xlane.xlu0 %1338
    %v1340 = vsel %vm85, %v996, -inf
    %1341 = vmax.xlane.f32.xlu0 %v1340
    %v1342 = vpop.xlane.xlu0 %1341
    %v1343 = vsel %vm85, %v1001, -inf
    %1344 = vmax.xlane.f32.xlu0 %v1343
    %v1345 = vpop.xlane.xlu0 %1344
    %v1346 = vsel %vm85, %v1006, -inf
    %1347 = vmax.xlane.f32.xlu0 %v1346
    %v1348 = vpop.xlane.xlu0 %1347
    %v1349 = vsel %vm85, %v1011, -inf
    %1350 = vmax.xlane.f32.xlu0 %v1349
    %v1351 = vpop.xlane.xlu0 %1350
    %v1352 = vsel %vm85, %v1129, -inf
    %1353 = vmax.xlane.f32.xlu0 %v1352
    %v1354 = vpop.xlane.xlu0 %1353
    %v1355 = vsel %vm85, %v1134, -inf
    %1356 = vmax.xlane.f32.xlu0 %v1355
    %v1357 = vpop.xlane.xlu0 %1356
    %v1358 = vsel %vm85, %v1139, -inf
    %1359 = vmax.xlane.f32.xlu0 %v1358
    %v1360 = vpop.xlane.xlu0 %1359
    %v1361 = vsel %vm85, %v1144, -inf
    %1362 = vmax.xlane.f32.xlu0 %v1361
    %v1363 = vpop.xlane.xlu0 %1362
    %v1364 = vsel %vm85, %v1262, -inf
    %1365 = vmax.xlane.f32.xlu0 %v1364
    %v1366 = vpop.xlane.xlu0 %1365
    %v1367 = vsel %vm85, %v1267, -inf
    %1368 = vmax.xlane.f32.xlu0 %v1367
    %v1369 = vpop.xlane.xlu0 %1368
    %v1370 = vsel %vm85, %v1272, -inf
    %1371 = vmax.xlane.f32.xlu0 %v1370
    %v1372 = vpop.xlane.xlu0 %1371
    %v1373 = vsel %vm85, %v1277, -inf
    %1374 = vmax.xlane.f32.xlu0 %v1373
    %v1375 = vpop.xlane.xlu0 %1374
    %v1376 = vsub.f32 %v331, %v1282
    %v1377 = vsub.f32 %v336, %v1285
    %v1378 = vsub.f32 %v341, %v1288
    %v1379 = vsub.f32 %v346, %v1291
    %v1380 = vsub.f32 %v464, %v1294
    %v1381 = vsub.f32 %v469, %v1297
    %v1382 = vsub.f32 %v474, %v1300
    %v1383 = vsub.f32 %v479, %v1303
    %v1384 = vsub.f32 %v597, %v1306
    %v1385 = vsub.f32 %v602, %v1309
    %v1386 = vsub.f32 %v607, %v1312
    %v1387 = vsub.f32 %v612, %v1315
    %v1388 = vsub.f32 %v730, %v1318
    %v1389 = vsub.f32 %v735, %v1321
    %v1390 = vsub.f32 %v740, %v1324
    %v1391 = vsub.f32 %v745, %v1327
    %v1392 = vsub.f32 %v863, %v1330
    %v1393 = vsub.f32 %v868, %v1333
    %v1394 = vsub.f32 %v873, %v1336
    %v1395 = vsub.f32 %v878, %v1339
    %v1396 = vsub.f32 %v996, %v1342
    %v1397 = vsub.f32 %v1001, %v1345
    %v1398 = vsub.f32 %v1006, %v1348
    %v1399 = vsub.f32 %v1011, %v1351
    %v1400 = vsub.f32 %v1129, %v1354
    %v1401 = vsub.f32 %v1134, %v1357
    %v1402 = vsub.f32 %v1139, %v1360
    %v1403 = vsub.f32 %v1144, %v1363
    %v1404 = vsub.f32 %v1262, %v1366
    %v1405 = vsub.f32 %v1267, %v1369
    %v1406 = vsub.f32 %v1272, %v1372
    %v1407 = vsub.f32 %v1277, %v1375
    %v1408 = vmul.f32 %v1376, 1.442695
    %v1409 = vpow.pop %v1408
    %v1410 = vmul.f32 %v1377, 1.442695
    %v1411 = vpow.pop %v1410
    %v1412 = vmul.f32 %v1378, 1.442695
    %v1413 = vpow.pop %v1412
    %v1414 = vmul.f32 %v1379, 1.442695
    %v1415 = vpow.pop %v1414
    %v1416 = vmul.f32 %v1380, 1.442695
    %v1417 = vpow.pop %v1416
    %v1418 = vmul.f32 %v1381, 1.442695
    %v1419 = vpow.pop %v1418
    %v1420 = vmul.f32 %v1382, 1.442695
    %v1421 = vpow.pop %v1420
    %v1422 = vmul.f32 %v1383, 1.442695
    %v1423 = vpow.pop %v1422
    %v1424 = vmul.f32 %v1384, 1.442695
    %v1425 = vpow.pop %v1424
    %v1426 = vmul.f32 %v1385, 1.442695
    %v1427 = vpow.pop %v1426
    %v1428 = vmul.f32 %v1386, 1.442695
    %v1429 = vpow.pop %v1428
    %v1430 = vmul.f32 %v1387, 1.442695
    %v1431 = vpow.pop %v1430
    %v1432 = vmul.f32 %v1388, 1.442695
    %v1433 = vpow.pop %v1432
    %v1434 = vmul.f32 %v1389, 1.442695
    %v1435 = vpow.pop %v1434
    %v1436 = vmul.f32 %v1390, 1.442695
    %v1437 = vpow.pop %v1436
    %v1438 = vmul.f32 %v1391, 1.442695
    %v1439 = vpow.pop %v1438
    %v1440 = vmul.f32 %v1392, 1.442695
    %v1441 = vpow.pop %v1440
    %v1442 = vmul.f32 %v1393, 1.442695
    %v1443 = vpow.pop %v1442
    %v1444 = vmul.f32 %v1394, 1.442695
    %v1445 = vpow.pop %v1444
    %v1446 = vmul.f32 %v1395, 1.442695
    %v1447 = vpow.pop %v1446
    %v1448 = vmul.f32 %v1396, 1.442695
    %v1449 = vpow.pop %v1448
    %v1450 = vmul.f32 %v1397, 1.442695
    %v1451 = vpow.pop %v1450
    %v1452 = vmul.f32 %v1398, 1.442695
    %v1453 = vpow.pop %v1452
    %v1454 = vmul.f32 %v1399, 1.442695
    %v1455 = vpow.pop %v1454
    %v1456 = vmul.f32 %v1400, 1.442695
    %v1457 = vpow.pop %v1456
    %v1458 = vmul.f32 %v1401, 1.442695
    %v1459 = vpow.pop %v1458
    %v1460 = vmul.f32 %v1402, 1.442695
    %v1461 = vpow.pop %v1460
    %v1462 = vmul.f32 %v1403, 1.442695
    %v1463 = vpow.pop %v1462
    %v1464 = vmul.f32 %v1404, 1.442695
    %v1465 = vpow.pop %v1464
    %v1466 = vmul.f32 %v1405, 1.442695
    %v1467 = vpow.pop %v1466
    %v1468 = vmul.f32 %v1406, 1.442695
    %v1469 = vpow.pop %v1468
    %v1470 = vmul.f32 %v1407, 1.442695
    %v1471 = vpow.pop %v1470
    %v1472 = vsel %vm85, %v1409, 0.0
    %1473 = vadd.xlane.f32.xlu0 %v1472
    %v1474 = vpop.xlane.xlu0 %1473
    %v1475 = vsel %vm85, %v1411, 0.0
    %1476 = vadd.xlane.f32.xlu0 %v1475
    %v1477 = vpop.xlane.xlu0 %1476
    %v1478 = vsel %vm85, %v1413, 0.0
    %1479 = vadd.xlane.f32.xlu0 %v1478
    %v1480 = vpop.xlane.xlu0 %1479
    %v1481 = vsel %vm85, %v1415, 0.0
    %1482 = vadd.xlane.f32.xlu0 %v1481
    %v1483 = vpop.xlane.xlu0 %1482
    %v1484 = vsel %vm85, %v1417, 0.0
    %1485 = vadd.xlane.f32.xlu0 %v1484
    %v1486 = vpop.xlane.xlu0 %1485
    %v1487 = vsel %vm85, %v1419, 0.0
    %1488 = vadd.xlane.f32.xlu0 %v1487
    %v1489 = vpop.xlane.xlu0 %1488
    %v1490 = vsel %vm85, %v1421, 0.0
    %1491 = vadd.xlane.f32.xlu0 %v1490
    %v1492 = vpop.xlane.xlu0 %1491
    %v1493 = vsel %vm85, %v1423, 0.0
    %1494 = vadd.xlane.f32.xlu0 %v1493
    %v1495 = vpop.xlane.xlu0 %1494
    %v1496 = vsel %vm85, %v1425, 0.0
    %1497 = vadd.xlane.f32.xlu0 %v1496
    %v1498 = vpop.xlane.xlu0 %1497
    %v1499 = vsel %vm85, %v1427, 0.0
    %1500 = vadd.xlane.f32.xlu0 %v1499
    %v1501 = vpop.xlane.xlu0 %1500
    %v1502 = vsel %vm85, %v1429, 0.0
    %1503 = vadd.xlane.f32.xlu0 %v1502
    %v1504 = vpop.xlane.xlu0 %1503
    %v1505 = vsel %vm85, %v1431, 0.0
    %1506 = vadd.xlane.f32.xlu0 %v1505
    %v1507 = vpop.xlane.xlu0 %1506
    %v1508 = vsel %vm85, %v1433, 0.0
    %1509 = vadd.xlane.f32.xlu0 %v1508
    %v1510 = vpop.xlane.xlu0 %1509
    %v1511 = vsel %vm85, %v1435, 0.0
    %1512 = vadd.xlane.f32.xlu0 %v1511
    %v1513 = vpop.xlane.xlu0 %1512
    %v1514 = vsel %vm85, %v1437, 0.0
    %1515 = vadd.xlane.f32.xlu0 %v1514
    %v1516 = vpop.xlane.xlu0 %1515
    %v1517 = vsel %vm85, %v1439, 0.0
    %1518 = vadd.xlane.f32.xlu0 %v1517
    %v1519 = vpop.xlane.xlu0 %1518
    %v1520 = vsel %vm85, %v1441, 0.0
    %1521 = vadd.xlane.f32.xlu0 %v1520
    %v1522 = vpop.xlane.xlu0 %1521
    %v1523 = vsel %vm85, %v1443, 0.0
    %1524 = vadd.xlane.f32.xlu0 %v1523
    %v1525 = vpop.xlane.xlu0 %1524
    %v1526 = vsel %vm85, %v1445, 0.0
    %1527 = vadd.xlane.f32.xlu0 %v1526
    %v1528 = vpop.xlane.xlu0 %1527
    %v1529 = vsel %vm85, %v1447, 0.0
    %1530 = vadd.xlane.f32.xlu0 %v1529
    %v1531 = vpop.xlane.xlu0 %1530
    %v1532 = vsel %vm85, %v1449, 0.0
    %1533 = vadd.xlane.f32.xlu0 %v1532
    %v1534 = vpop.xlane.xlu0 %1533
    %v1535 = vsel %vm85, %v1451, 0.0
    %1536 = vadd.xlane.f32.xlu0 %v1535
    %v1537 = vpop.xlane.xlu0 %1536
    %v1538 = vsel %vm85, %v1453, 0.0
    %1539 = vadd.xlane.f32.xlu0 %v1538
    %v1540 = vpop.xlane.xlu0 %1539
    %v1541 = vsel %vm85, %v1455, 0.0
    %1542 = vadd.xlane.f32.xlu0 %v1541
    %v1543 = vpop.xlane.xlu0 %1542
    %v1544 = vsel %vm85, %v1457, 0.0
    %1545 = vadd.xlane.f32.xlu0 %v1544
    %v1546 = vpop.xlane.xlu0 %1545
    %v1547 = vsel %vm85, %v1459, 0.0
    %1548 = vadd.xlane.f32.xlu0 %v1547
    %v1549 = vpop.xlane.xlu0 %1548
    %v1550 = vsel %vm85, %v1461, 0.0
    %1551 = vadd.xlane.f32.xlu0 %v1550
    %v1552 = vpop.xlane.xlu0 %1551
    %v1553 = vsel %vm85, %v1463, 0.0
    %1554 = vadd.xlane.f32.xlu0 %v1553
    %v1555 = vpop.xlane.xlu0 %1554
    %v1556 = vsel %vm85, %v1465, 0.0
    %1557 = vadd.xlane.f32.xlu0 %v1556
    %v1558 = vpop.xlane.xlu0 %1557
    %v1559 = vsel %vm85, %v1467, 0.0
    %1560 = vadd.xlane.f32.xlu0 %v1559
    %v1561 = vpop.xlane.xlu0 %1560
    %v1562 = vsel %vm85, %v1469, 0.0
    %1563 = vadd.xlane.f32.xlu0 %v1562
    %v1564 = vpop.xlane.xlu0 %1563
    %v1565 = vsel %vm85, %v1471, 0.0
    %1566 = vadd.xlane.f32.xlu0 %v1565
    %v1567 = vpop.xlane.xlu0 %1566
    %v1568 = vrcp.pop %v1474
    %v1569 = vmul.f32 %v1409, %v1568
    %v1570 = vrcp.pop %v1477
    %v1571 = vmul.f32 %v1411, %v1570
    %v1572 = vrcp.pop %v1480
    %v1573 = vmul.f32 %v1413, %v1572
    %v1574 = vrcp.pop %v1483
    %v1575 = vmul.f32 %v1415, %v1574
    %v1576 = vrcp.pop %v1486
    %v1577 = vmul.f32 %v1417, %v1576
    %v1578 = vrcp.pop %v1489
    %v1579 = vmul.f32 %v1419, %v1578
    %v1580 = vrcp.pop %v1492
    %v1581 = vmul.f32 %v1421, %v1580
    %v1582 = vrcp.pop %v1495
    %v1583 = vmul.f32 %v1423, %v1582
    %v1584 = vrcp.pop %v1498
    %v1585 = vmul.f32 %v1425, %v1584
    %v1586 = vrcp.pop %v1501
    %v1587 = vmul.f32 %v1427, %v1586
    %v1588 = vrcp.pop %v1504
    %v1589 = vmul.f32 %v1429, %v1588
    %v1590 = vrcp.pop %v1507
    %v1591 = vmul.f32 %v1431, %v1590
    %v1592 = vrcp.pop %v1510
    %v1593 = vmul.f32 %v1433, %v1592
    %v1594 = vrcp.pop %v1513
    %v1595 = vmul.f32 %v1435, %v1594
    %v1596 = vrcp.pop %v1516
    %v1597 = vmul.f32 %v1437, %v1596
    %v1598 = vrcp.pop %v1519
    %v1599 = vmul.f32 %v1439, %v1598
    %v1600 = vrcp.pop %v1522
    %v1601 = vmul.f32 %v1441, %v1600
    %v1602 = vrcp.pop %v1525
    %v1603 = vmul.f32 %v1443, %v1602
    %v1604 = vrcp.pop %v1528
    %v1605 = vmul.f32 %v1445, %v1604
    %v1606 = vrcp.pop %v1531
    %v1607 = vmul.f32 %v1447, %v1606
    %v1608 = vrcp.pop %v1534
    %v1609 = vmul.f32 %v1449, %v1608
    %v1610 = vrcp.pop %v1537
    %v1611 = vmul.f32 %v1451, %v1610
    %v1612 = vrcp.pop %v1540
    %v1613 = vmul.f32 %v1453, %v1612
    %v1614 = vrcp.pop %v1543
    %v1615 = vmul.f32 %v1455, %v1614
    %v1616 = vrcp.pop %v1546
    %v1617 = vmul.f32 %v1457, %v1616
    %v1618 = vrcp.pop %v1549
    %v1619 = vmul.f32 %v1459, %v1618
    %v1620 = vrcp.pop %v1552
    %v1621 = vmul.f32 %v1461, %v1620
    %v1622 = vrcp.pop %v1555
    %v1623 = vmul.f32 %v1463, %v1622
    %v1624 = vrcp.pop %v1558
    %v1625 = vmul.f32 %v1465, %v1624
    %v1626 = vrcp.pop %v1561
    %v1627 = vmul.f32 %v1467, %v1626
    %v1628 = vrcp.pop %v1564
    %v1629 = vmul.f32 %v1469, %v1628
    %v1630 = vrcp.pop %v1567
    %v1631 = vmul.f32 %v1471, %v1630
    %v1632 = vld [vmem:[#allocation8] sm:$0xff]
    %v1633 = vld [vmem:[#allocation8 + $0x8] sm:$0xff]
    %v1634 = vld [vmem:[#allocation8 + $0x10] sm:$0xff]
    %v1635 = vld [vmem:[#allocation8 + $0x18] sm:$0xff]
    %v1636 = vld [vmem:[%s5] sm:$0x1]
    %v1638 = vlaneseq
    %v1639 = vshrl.u32 %v1638, 7
    %v1640 = vsub.s32 0, %v1639
    %v1641 = vrot.slane %v1636, %v1640
    %1643 = vmatprep.subr.mxu0 0.0
    %1644 = vmatpush1.msra.mxu0 0.0
    %1645 = vmatprep.subr.mxu0 0.0
    %1646 = vmatpush1.msra.mxu0 0.0
    %1647 = vmatprep.subr.mxu0 0.0
    %1648 = vmatpush1.msra.mxu0 0.0
    %1649 = vmatprep.subr.mxu0 0.0
    %1650 = vmatpush1.msra.mxu0 0.0
    %1651 = vmatprep.subr.mxu0 0.0
    %1652 = vmatpush1.msra.mxu0 0.0
    %1653 = vmatprep.subr.mxu0 0.0
    %1654 = vmatpush1.msra.mxu0 0.0
    %1655 = vmatprep.subr.mxu0 0.0
    %1656 = vmatpush1.msra.mxu0 0.0
    %1657 = vmatprep.subr.mxu0 0.0
    %1658 = vmatpush1.msra.mxu0 0.0
    %1659 = vmatprep.subr.mxu0 0.0
    %1660 = vmatpush1.msra.mxu0 0.0
    %1661 = vmatprep.subr.mxu0 0.0
    %1662 = vmatpush1.msra.mxu0 0.0
    %1663 = vmatprep.subr.mxu0 0.0
    %1664 = vmatpush1.msra.mxu0 0.0
    %1665 = vmatprep.subr.mxu0 0.0
    %1666 = vmatpush1.msra.mxu0 0.0
    %1667 = vmatprep.subr.mxu0 0.0
    %1668 = vmatpush1.msra.mxu0 %v1635
    %1669 = vmatprep.subr.mxu0 0.0
    %1670 = vmatpush1.msra.mxu0 %v1634
    %1671 = vmatprep.subr.mxu0 0.0
    %1672 = vmatpush1.msra.mxu0 %v1633
    %1673 = vmatprep.subr.mxu0 0.0
    %1674 = vmatpush1.msra.mxu0 %v1632
    %1675 = vmatprep.subr.mxu0 0.0
    %1676 = vmatpush2.msra.mxu0 0.0
    %1677 = vmatprep.subr.mxu0 0.0
    %1678 = vmatpush2.msra.mxu0 0.0
    %1679 = vmatprep.subr.mxu0 0.0
    %1680 = vmatpush2.msra.mxu0 0.0
    %1681 = vmatprep.subr.mxu0 0.0
    %1682 = vmatpush2.msra.mxu0 0.0
    %1683 = vmatprep.subr.mxu0 0.0
    %1684 = vmatpush2.msra.mxu0 0.0
    %1685 = vmatprep.subr.mxu0 0.0
    %1686 = vmatpush2.msra.mxu0 0.0
    %1687 = vmatprep.subr.mxu0 0.0
    %1688 = vmatpush2.msra.mxu0 0.0
    %1689 = vmatprep.subr.mxu0 0.0
    %1690 = vmatpush2.msra.mxu0 0.0
    %1691 = vmatprep.subr.mxu0 0.0
    %1692 = vmatpush2.msra.mxu0 0.0
    %1693 = vmatprep.subr.mxu0 0.0
    %1694 = vmatpush2.msra.mxu0 0.0
    %1695 = vmatprep.subr.mxu0 0.0
    %1696 = vmatpush2.msra.mxu0 0.0
    %1697 = vmatprep.subr.mxu0 0.0
    %1698 = vmatpush2.msra.mxu0 0.0
    %1699 = vmatprep.subr.mxu0 0.0
    %1700 = vmatpush2.msra.mxu0 0.0
    %1701 = vmatprep.subr.mxu0 0.0
    %1702 = vmatpush2.msra.mxu0 0.0
    %1703 = vmatprep.subr.mxu0 0.0
    %1704 = vmatpush2.msra.mxu0 0.0
    %1705 = vmatprep.subr.mxu0 0.0
    %1706 = vmatpush2.msra.mxu0 0.0
    %1707 = vmatprep.mubr.f32.mxu0 0.0
    %1708 = vmatmul.mubr.f32.gmra.mxu0 %v87
    %v1709 = vpop.f32.mrf.mxu0
    %v1710 = vadd.f32 %v1641, %v1709
    %v1711 = vpop.f32.mrf.mxu0
    %1712 = vmatprep.mubr.f32.mxu0 0.0
    %1713 = vmatmul.mubr.f32.gmra.mxu0 %v90
    %v1714 = vpop.f32.mrf.mxu0
    %v1715 = vadd.f32 %v1641, %v1714
    %v1716 = vpop.f32.mrf.mxu0
    %1717 = vmatprep.mubr.f32.mxu0 0.0
    %1718 = vmatmul.mubr.f32.gmra.mxu0 %v93
    %v1719 = vpop.f32.mrf.mxu0
    %v1720 = vadd.f32 %v1641, %v1719
    %v1721 = vpop.f32.mrf.mxu0
    %1722 = vmatprep.mubr.f32.mxu0 0.0
    %1723 = vmatmul.mubr.f32.gmra.mxu0 %v96
    %v1724 = vpop.f32.mrf.mxu0
    %v1725 = vadd.f32 %v1641, %v1724
    %v1726 = vpop.f32.mrf.mxu0
    %1727 = vmatprep.mubr.f32.mxu0 0.0
    %1728 = vmatmul.mubr.f32.gmra.mxu0 %v99
    %v1729 = vpop.f32.mrf.mxu0
    %v1730 = vadd.f32 %v1641, %v1729
    %v1731 = vpop.f32.mrf.mxu0
    %1732 = vmatprep.mubr.f32.mxu0 0.0
    %1733 = vmatmul.mubr.f32.gmra.mxu0 %v102
    %v1734 = vpop.f32.mrf.mxu0
    %v1735 = vadd.f32 %v1641, %v1734
    %v1736 = vpop.f32.mrf.mxu0
    %1737 = vmatprep.mubr.f32.mxu0 0.0
    %1738 = vmatmul.mubr.f32.gmra.mxu0 %v105
    %v1739 = vpop.f32.mrf.mxu0
    %v1740 = vadd.f32 %v1641, %v1739
    %v1741 = vpop.f32.mrf.mxu0
    %1742 = vmatprep.mubr.f32.mxu0 0.0
    %1743 = vmatmul.mubr.f32.gmra.mxu0 %v108
    %v1744 = vpop.f32.mrf.mxu0
    %v1745 = vadd.f32 %v1641, %v1744
    %v1746 = vpop.f32.mrf.mxu0
    %1747 = vdwg.mxu0
    %v1749 = vsel %vm85, %v1710, 0
    %v1752 = vsel %vm85, %v1569, 0
    %v1755 = vsel %vm85, %v1571, 0
    %v1758 = vsel %vm85, %v1573, 0
    %v1761 = vsel %vm85, %v1575, 0
    %1763 = vmatprep.subr.mxu0 0.0
    %1764 = vmatpush1.xpose.msra.mxu0 0.0
    %1765 = vmatprep.subr.mxu0 0.0
    %1766 = vmatpush1.xpose.msra.mxu0 0.0
    %1767 = vmatprep.subr.mxu0 0.0
    %1768 = vmatpush1.xpose.msra.mxu0 0.0
    %1769 = vmatprep.subr.mxu0 0.0
    %1770 = vmatpush1.xpose.msra.mxu0 0.0
    %1771 = vmatprep.subr.mxu0 0.0
    %1772 = vmatpush1.xpose.msra.mxu0 0.0
    %1773 = vmatprep.subr.mxu0 0.0
    %1774 = vmatpush1.xpose.msra.mxu0 0.0
    %1775 = vmatprep.subr.mxu0 0.0
    %1776 = vmatpush1.xpose.msra.mxu0 0.0
    %1777 = vmatprep.subr.mxu0 0.0
    %1778 = vmatpush1.xpose.msra.mxu0 0.0
    %1779 = vmatprep.subr.mxu0 0.0
    %1780 = vmatpush1.xpose.msra.mxu0 0.0
    %1781 = vmatprep.subr.mxu0 0.0
    %1782 = vmatpush1.xpose.msra.mxu0 0.0
    %1783 = vmatprep.subr.mxu0 0.0
    %1784 = vmatpush1.xpose.msra.mxu0 0.0
    %1785 = vmatprep.subr.mxu0 0.0
    %1786 = vmatpush1.xpose.msra.mxu0 0.0
    %1787 = vmatprep.subr.mxu0 0.0
    %1788 = vmatpush1.xpose.msra.mxu0 %v1761
    %1789 = vmatprep.subr.mxu0 0.0
    %1790 = vmatpush1.xpose.msra.mxu0 %v1758
    %1791 = vmatprep.subr.mxu0 0.0
    %1792 = vmatpush1.xpose.msra.mxu0 %v1755
    %1793 = vmatprep.subr.mxu0 0.0
    %1794 = vmatpush1.xpose.msra.mxu0 %v1752
    %1795 = vmatprep.subr.mxu0 0.0
    %1796 = vmatpush2.xpose.msra.mxu0 0.0
    %1797 = vmatprep.subr.mxu0 0.0
    %1798 = vmatpush2.xpose.msra.mxu0 0.0
    %1799 = vmatprep.subr.mxu0 0.0
    %1800 = vmatpush2.xpose.msra.mxu0 0.0
    %1801 = vmatprep.subr.mxu0 0.0
    %1802 = vmatpush2.xpose.msra.mxu0 0.0
    %1803 = vmatprep.subr.mxu0 0.0
    %1804 = vmatpush2.xpose.msra.mxu0 0.0
    %1805 = vmatprep.subr.mxu0 0.0
    %1806 = vmatpush2.xpose.msra.mxu0 0.0
    %1807 = vmatprep.subr.mxu0 0.0
    %1808 = vmatpush2.xpose.msra.mxu0 0.0
    %1809 = vmatprep.subr.mxu0 0.0
    %1810 = vmatpush2.xpose.msra.mxu0 0.0
    %1811 = vmatprep.subr.mxu0 0.0
    %1812 = vmatpush2.xpose.msra.mxu0 0.0
    %1813 = vmatprep.subr.mxu0 0.0
    %1814 = vmatpush2.xpose.msra.mxu0 0.0
    %1815 = vmatprep.subr.mxu0 0.0
    %1816 = vmatpush2.xpose.msra.mxu0 0.0
    %1817 = vmatprep.subr.mxu0 0.0
    %1818 = vmatpush2.xpose.msra.mxu0 0.0
    %1819 = vmatprep.subr.mxu0 0.0
    %1820 = vmatpush2.xpose.msra.mxu0 0.0
    %1821 = vmatprep.subr.mxu0 0.0
    %1822 = vmatpush2.xpose.msra.mxu0 0.0
    %1823 = vmatprep.subr.mxu0 0.0
    %1824 = vmatpush2.xpose.msra.mxu0 0.0
    %1825 = vmatprep.subr.mxu0 0.0
    %1826 = vmatpush2.xpose.msra.mxu0 0.0
    %1827 = vmatprep.mubr.f32.mxu0 0.0
    %1828 = vmatmul.mubr.f32.gmra.mxu0 %v1749
    %v1829 = vpop.f32.mrf.mxu0
    %v1830 = vadd.f32 0.0, %v1829
    %v1831 = vpop.f32.mrf.mxu0
    %1832 = vdwg.mxu0
    %v1834 = vsel %vm85, %v1715, 0
    %v1837 = vsel %vm85, %v1577, 0
    %v1840 = vsel %vm85, %v1579, 0
    %v1843 = vsel %vm85, %v1581, 0
    %v1846 = vsel %vm85, %v1583, 0
    %1848 = vmatprep.subr.mxu0 0.0
    %1849 = vmatpush1.xpose.msra.mxu0 0.0
    %1850 = vmatprep.subr.mxu0 0.0
    %1851 = vmatpush1.xpose.msra.mxu0 0.0
    %1852 = vmatprep.subr.mxu0 0.0
    %1853 = vmatpush1.xpose.msra.mxu0 0.0
    %1854 = vmatprep.subr.mxu0 0.0
    %1855 = vmatpush1.xpose.msra.mxu0 0.0
    %1856 = vmatprep.subr.mxu0 0.0
    %1857 = vmatpush1.xpose.msra.mxu0 0.0
    %1858 = vmatprep.subr.mxu0 0.0
    %1859 = vmatpush1.xpose.msra.mxu0 0.0
    %1860 = vmatprep.subr.mxu0 0.0
    %1861 = vmatpush1.xpose.msra.mxu0 0.0
    %1862 = vmatprep.subr.mxu0 0.0
    %1863 = vmatpush1.xpose.msra.mxu0 0.0
    %1864 = vmatprep.subr.mxu0 0.0
    %1865 = vmatpush1.xpose.msra.mxu0 0.0
    %1866 = vmatprep.subr.mxu0 0.0
    %1867 = vmatpush1.xpose.msra.mxu0 0.0
    %1868 = vmatprep.subr.mxu0 0.0
    %1869 = vmatpush1.xpose.msra.mxu0 0.0
    %1870 = vmatprep.subr.mxu0 0.0
    %1871 = vmatpush1.xpose.msra.mxu0 0.0
    %1872 = vmatprep.subr.mxu0 0.0
    %1873 = vmatpush1.xpose.msra.mxu0 %v1846
    %1874 = vmatprep.subr.mxu0 0.0
    %1875 = vmatpush1.xpose.msra.mxu0 %v1843
    %1876 = vmatprep.subr.mxu0 0.0
    %1877 = vmatpush1.xpose.msra.mxu0 %v1840
    %1878 = vmatprep.subr.mxu0 0.0
    %1879 = vmatpush1.xpose.msra.mxu0 %v1837
    %1880 = vmatprep.subr.mxu0 0.0
    %1881 = vmatpush2.xpose.msra.mxu0 0.0
    %1882 = vmatprep.subr.mxu0 0.0
    %1883 = vmatpush2.xpose.msra.mxu0 0.0
    %1884 = vmatprep.subr.mxu0 0.0
    %1885 = vmatpush2.xpose.msra.mxu0 0.0
    %1886 = vmatprep.subr.mxu0 0.0
    %1887 = vmatpush2.xpose.msra.mxu0 0.0
    %1888 = vmatprep.subr.mxu0 0.0
    %1889 = vmatpush2.xpose.msra.mxu0 0.0
    %1890 = vmatprep.subr.mxu0 0.0
    %1891 = vmatpush2.xpose.msra.mxu0 0.0
    %1892 = vmatprep.subr.mxu0 0.0
    %1893 = vmatpush2.xpose.msra.mxu0 0.0
    %1894 = vmatprep.subr.mxu0 0.0
    %1895 = vmatpush2.xpose.msra.mxu0 0.0
    %1896 = vmatprep.subr.mxu0 0.0
    %1897 = vmatpush2.xpose.msra.mxu0 0.0
    %1898 = vmatprep.subr.mxu0 0.0
    %1899 = vmatpush2.xpose.msra.mxu0 0.0
    %1900 = vmatprep.subr.mxu0 0.0
    %1901 = vmatpush2.xpose.msra.mxu0 0.0
    %1902 = vmatprep.subr.mxu0 0.0
    %1903 = vmatpush2.xpose.msra.mxu0 0.0
    %1904 = vmatprep.subr.mxu0 0.0
    %1905 = vmatpush2.xpose.msra.mxu0 0.0
    %1906 = vmatprep.subr.mxu0 0.0
    %1907 = vmatpush2.xpose.msra.mxu0 0.0
    %1908 = vmatprep.subr.mxu0 0.0
    %1909 = vmatpush2.xpose.msra.mxu0 0.0
    %1910 = vmatprep.subr.mxu0 0.0
    %1911 = vmatpush2.xpose.msra.mxu0 0.0
    %1912 = vmatprep.mubr.f32.mxu0 0.0
    %1913 = vmatmul.mubr.f32.gmra.mxu0 %v1834
    %v1914 = vpop.f32.mrf.mxu0
    %v1915 = vadd.f32 0.0, %v1914
    %v1916 = vpop.f32.mrf.mxu0
    %1917 = vdwg.mxu0
    %v1919 = vsel %vm85, %v1720, 0
    %v1922 = vsel %vm85, %v1585, 0
    %v1925 = vsel %vm85, %v1587, 0
    %v1928 = vsel %vm85, %v1589, 0
    %v1931 = vsel %vm85, %v1591, 0
    %1933 = vmatprep.subr.mxu0 0.0
    %1934 = vmatpush1.xpose.msra.mxu0 0.0
    %1935 = vmatprep.subr.mxu0 0.0
    %1936 = vmatpush1.xpose.msra.mxu0 0.0
    %1937 = vmatprep.subr.mxu0 0.0
    %1938 = vmatpush1.xpose.msra.mxu0 0.0
    %1939 = vmatprep.subr.mxu0 0.0
    %1940 = vmatpush1.xpose.msra.mxu0 0.0
    %1941 = vmatprep.subr.mxu0 0.0
    %1942 = vmatpush1.xpose.msra.mxu0 0.0
    %1943 = vmatprep.subr.mxu0 0.0
    %1944 = vmatpush1.xpose.msra.mxu0 0.0
    %1945 = vmatprep.subr.mxu0 0.0
    %1946 = vmatpush1.xpose.msra.mxu0 0.0
    %1947 = vmatprep.subr.mxu0 0.0
    %1948 = vmatpush1.xpose.msra.mxu0 0.0
    %1949 = vmatprep.subr.mxu0 0.0
    %1950 = vmatpush1.xpose.msra.mxu0 0.0
    %1951 = vmatprep.subr.mxu0 0.0
    %1952 = vmatpush1.xpose.msra.mxu0 0.0
    %1953 = vmatprep.subr.mxu0 0.0
    %1954 = vmatpush1.xpose.msra.mxu0 0.0
    %1955 = vmatprep.subr.mxu0 0.0
    %1956 = vmatpush1.xpose.msra.mxu0 0.0
    %1957 = vmatprep.subr.mxu0 0.0
    %1958 = vmatpush1.xpose.msra.mxu0 %v1931
    %1959 = vmatprep.subr.mxu0 0.0
    %1960 = vmatpush1.xpose.msra.mxu0 %v1928
    %1961 = vmatprep.subr.mxu0 0.0
    %1962 = vmatpush1.xpose.msra.mxu0 %v1925
    %1963 = vmatprep.subr.mxu0 0.0
    %1964 = vmatpush1.xpose.msra.mxu0 %v1922
    %1965 = vmatprep.subr.mxu0 0.0
    %1966 = vmatpush2.xpose.msra.mxu0 0.0
    %1967 = vmatprep.subr.mxu0 0.0
    %1968 = vmatpush2.xpose.msra.mxu0 0.0
    %1969 = vmatprep.subr.mxu0 0.0
    %1970 = vmatpush2.xpose.msra.mxu0 0.0
    %1971 = vmatprep.subr.mxu0 0.0
    %1972 = vmatpush2.xpose.msra.mxu0 0.0
    %1973 = vmatprep.subr.mxu0 0.0
    %1974 = vmatpush2.xpose.msra.mxu0 0.0
    %1975 = vmatprep.subr.mxu0 0.0
    %1976 = vmatpush2.xpose.msra.mxu0 0.0
    %1977 = vmatprep.subr.mxu0 0.0
    %1978 = vmatpush2.xpose.msra.mxu0 0.0
    %1979 = vmatprep.subr.mxu0 0.0
    %1980 = vmatpush2.xpose.msra.mxu0 0.0
    %1981 = vmatprep.subr.mxu0 0.0
    %1982 = vmatpush2.xpose.msra.mxu0 0.0
    %1983 = vmatprep.subr.mxu0 0.0
    %1984 = vmatpush2.xpose.msra.mxu0 0.0
    %1985 = vmatprep.subr.mxu0 0.0
    %1986 = vmatpush2.xpose.msra.mxu0 0.0
    %1987 = vmatprep.subr.mxu0 0.0
    %1988 = vmatpush2.xpose.msra.mxu0 0.0
    %1989 = vmatprep.subr.mxu0 0.0
    %1990 = vmatpush2.xpose.msra.mxu0 0.0
    %1991 = vmatprep.subr.mxu0 0.0
    %1992 = vmatpush2.xpose.msra.mxu0 0.0
    %1993 = vmatprep.subr.mxu0 0.0
    %1994 = vmatpush2.xpose.msra.mxu0 0.0
    %1995 = vmatprep.subr.mxu0 0.0
    %1996 = vmatpush2.xpose.msra.mxu0 0.0
    %1997 = vmatprep.mubr.f32.mxu0 0.0
    %1998 = vmatmul.mubr.f32.gmra.mxu0 %v1919
    %v1999 = vpop.f32.mrf.mxu0
    %v2000 = vadd.f32 0.0, %v1999
    %v2001 = vpop.f32.mrf.mxu0
    %2002 = vdwg.mxu0
    %v2004 = vsel %vm85, %v1725, 0
    %v2007 = vsel %vm85, %v1593, 0
    %v2010 = vsel %vm85, %v1595, 0
    %v2013 = vsel %vm85, %v1597, 0
    %v2016 = vsel %vm85, %v1599, 0
    %2018 = vmatprep.subr.mxu0 0.0
    %2019 = vmatpush1.xpose.msra.mxu0 0.0
    %2020 = vmatprep.subr.mxu0 0.0
    %2021 = vmatpush1.xpose.msra.mxu0 0.0
    %2022 = vmatprep.subr.mxu0 0.0
    %2023 = vmatpush1.xpose.msra.mxu0 0.0
    %2024 = vmatprep.subr.mxu0 0.0
    %2025 = vmatpush1.xpose.msra.mxu0 0.0
    %2026 = vmatprep.subr.mxu0 0.0
    %2027 = vmatpush1.xpose.msra.mxu0 0.0
    %2028 = vmatprep.subr.mxu0 0.0
    %2029 = vmatpush1.xpose.msra.mxu0 0.0
    %2030 = vmatprep.subr.mxu0 0.0
    %2031 = vmatpush1.xpose.msra.mxu0 0.0
    %2032 = vmatprep.subr.mxu0 0.0
    %2033 = vmatpush1.xpose.msra.mxu0 0.0
    %2034 = vmatprep.subr.mxu0 0.0
    %2035 = vmatpush1.xpose.msra.mxu0 0.0
    %2036 = vmatprep.subr.mxu0 0.0
    %2037 = vmatpush1.xpose.msra.mxu0 0.0
    %2038 = vmatprep.subr.mxu0 0.0
    %2039 = vmatpush1.xpose.msra.mxu0 0.0
    %2040 = vmatprep.subr.mxu0 0.0
    %2041 = vmatpush1.xpose.msra.mxu0 0.0
    %2042 = vmatprep.subr.mxu0 0.0
    %2043 = vmatpush1.xpose.msra.mxu0 %v2016
    %2044 = vmatprep.subr.mxu0 0.0
    %2045 = vmatpush1.xpose.msra.mxu0 %v2013
    %2046 = vmatprep.subr.mxu0 0.0
    %2047 = vmatpush1.xpose.msra.mxu0 %v2010
    %2048 = vmatprep.subr.mxu0 0.0
    %2049 = vmatpush1.xpose.msra.mxu0 %v2007
    %2050 = vmatprep.subr.mxu0 0.0
    %2051 = vmatpush2.xpose.msra.mxu0 0.0
    %2052 = vmatprep.subr.mxu0 0.0
    %2053 = vmatpush2.xpose.msra.mxu0 0.0
    %2054 = vmatprep.subr.mxu0 0.0
    %2055 = vmatpush2.xpose.msra.mxu0 0.0
    %2056 = vmatprep.subr.mxu0 0.0
    %2057 = vmatpush2.xpose.msra.mxu0 0.0
    %2058 = vmatprep.subr.mxu0 0.0
    %2059 = vmatpush2.xpose.msra.mxu0 0.0
    %2060 = vmatprep.subr.mxu0 0.0
    %2061 = vmatpush2.xpose.msra.mxu0 0.0
    %2062 = vmatprep.subr.mxu0 0.0
    %2063 = vmatpush2.xpose.msra.mxu0 0.0
    %2064 = vmatprep.subr.mxu0 0.0
    %2065 = vmatpush2.xpose.msra.mxu0 0.0
    %2066 = vmatprep.subr.mxu0 0.0
    %2067 = vmatpush2.xpose.msra.mxu0 0.0
    %2068 = vmatprep.subr.mxu0 0.0
    %2069 = vmatpush2.xpose.msra.mxu0 0.0
    %2070 = vmatprep.subr.mxu0 0.0
    %2071 = vmatpush2.xpose.msra.mxu0 0.0
    %2072 = vmatprep.subr.mxu0 0.0
    %2073 = vmatpush2.xpose.msra.mxu0 0.0
    %2074 = vmatprep.subr.mxu0 0.0
    %2075 = vmatpush2.xpose.msra.mxu0 0.0
    %2076 = vmatprep.subr.mxu0 0.0
    %2077 = vmatpush2.xpose.msra.mxu0 0.0
    %2078 = vmatprep.subr.mxu0 0.0
    %2079 = vmatpush2.xpose.msra.mxu0 0.0
    %2080 = vmatprep.subr.mxu0 0.0
    %2081 = vmatpush2.xpose.msra.mxu0 0.0
    %2082 = vmatprep.mubr.f32.mxu0 0.0
    %2083 = vmatmul.mubr.f32.gmra.mxu0 %v2004
    %v2084 = vpop.f32.mrf.mxu0
    %v2085 = vadd.f32 0.0, %v2084
    %v2086 = vpop.f32.mrf.mxu0
    %2087 = vdwg.mxu0
    %v2089 = vsel %vm85, %v1730, 0
    %v2092 = vsel %vm85, %v1601, 0
    %v2095 = vsel %vm85, %v1603, 0
    %v2098 = vsel %vm85, %v1605, 0
    %v2101 = vsel %vm85, %v1607, 0
    %2103 = vmatprep.subr.mxu0 0.0
    %2104 = vmatpush1.xpose.msra.mxu0 0.0
    %2105 = vmatprep.subr.mxu0 0.0
    %2106 = vmatpush1.xpose.msra.mxu0 0.0
    %2107 = vmatprep.subr.mxu0 0.0
    %2108 = vmatpush1.xpose.msra.mxu0 0.0
    %2109 = vmatprep.subr.mxu0 0.0
    %2110 = vmatpush1.xpose.msra.mxu0 0.0
    %2111 = vmatprep.subr.mxu0 0.0
    %2112 = vmatpush1.xpose.msra.mxu0 0.0
    %2113 = vmatprep.subr.mxu0 0.0
    %2114 = vmatpush1.xpose.msra.mxu0 0.0
    %2115 = vmatprep.subr.mxu0 0.0
    %2116 = vmatpush1.xpose.msra.mxu0 0.0
    %2117 = vmatprep.subr.mxu0 0.0
    %2118 = vmatpush1.xpose.msra.mxu0 0.0
    %2119 = vmatprep.subr.mxu0 0.0
    %2120 = vmatpush1.xpose.msra.mxu0 0.0
    %2121 = vmatprep.subr.mxu0 0.0
    %2122 = vmatpush1.xpose.msra.mxu0 0.0
    %2123 = vmatprep.subr.mxu0 0.0
    %2124 = vmatpush1.xpose.msra.mxu0 0.0
    %2125 = vmatprep.subr.mxu0 0.0
    %2126 = vmatpush1.xpose.msra.mxu0 0.0
    %2127 = vmatprep.subr.mxu0 0.0
    %2128 = vmatpush1.xpose.msra.mxu0 %v2101
    %2129 = vmatprep.subr.mxu0 0.0
    %2130 = vmatpush1.xpose.msra.mxu0 %v2098
    %2131 = vmatprep.subr.mxu0 0.0
    %2132 = vmatpush1.xpose.msra.mxu0 %v2095
    %2133 = vmatprep.subr.mxu0 0.0
    %2134 = vmatpush1.xpose.msra.mxu0 %v2092
    %2135 = vmatprep.subr.mxu0 0.0
    %2136 = vmatpush2.xpose.msra.mxu0 0.0
    %2137 = vmatprep.subr.mxu0 0.0
    %2138 = vmatpush2.xpose.msra.mxu0 0.0
    %2139 = vmatprep.subr.mxu0 0.0
    %2140 = vmatpush2.xpose.msra.mxu0 0.0
    %2141 = vmatprep.subr.mxu0 0.0
    %2142 = vmatpush2.xpose.msra.mxu0 0.0
    %2143 = vmatprep.subr.mxu0 0.0
    %2144 = vmatpush2.xpose.msra.mxu0 0.0
    %2145 = vmatprep.subr.mxu0 0.0
    %2146 = vmatpush2.xpose.msra.mxu0 0.0
    %2147 = vmatprep.subr.mxu0 0.0
    %2148 = vmatpush2.xpose.msra.mxu0 0.0
    %2149 = vmatprep.subr.mxu0 0.0
    %2150 = vmatpush2.xpose.msra.mxu0 0.0
    %2151 = vmatprep.subr.mxu0 0.0
    %2152 = vmatpush2.xpose.msra.mxu0 0.0
    %2153 = vmatprep.subr.mxu0 0.0
    %2154 = vmatpush2.xpose.msra.mxu0 0.0
    %2155 = vmatprep.subr.mxu0 0.0
    %2156 = vmatpush2.xpose.msra.mxu0 0.0
    %2157 = vmatprep.subr.mxu0 0.0
    %2158 = vmatpush2.xpose.msra.mxu0 0.0
    %2159 = vmatprep.subr.mxu0 0.0
    %2160 = vmatpush2.xpose.msra.mxu0 0.0
    %2161 = vmatprep.subr.mxu0 0.0
    %2162 = vmatpush2.xpose.msra.mxu0 0.0
    %2163 = vmatprep.subr.mxu0 0.0
    %2164 = vmatpush2.xpose.msra.mxu0 0.0
    %2165 = vmatprep.subr.mxu0 0.0
    %2166 = vmatpush2.xpose.msra.mxu0 0.0
    %2167 = vmatprep.mubr.f32.mxu0 0.0
    %2168 = vmatmul.mubr.f32.gmra.mxu0 %v2089
    %v2169 = vpop.f32.mrf.mxu0
    %v2170 = vadd.f32 0.0, %v2169
    %v2171 = vpop.f32.mrf.mxu0
    %2172 = vdwg.mxu0
    %v2174 = vsel %vm85, %v1735, 0
    %v2177 = vsel %vm85, %v1609, 0
    %v2180 = vsel %vm85, %v1611, 0
    %v2183 = vsel %vm85, %v1613, 0
    %v2186 = vsel %vm85, %v1615, 0
    %2188 = vmatprep.subr.mxu0 0.0
    %2189 = vmatpush1.xpose.msra.mxu0 0.0
    %2190 = vmatprep.subr.mxu0 0.0
    %2191 = vmatpush1.xpose.msra.mxu0 0.0
    %2192 = vmatprep.subr.mxu0 0.0
    %2193 = vmatpush1.xpose.msra.mxu0 0.0
    %2194 = vmatprep.subr.mxu0 0.0
    %2195 = vmatpush1.xpose.msra.mxu0 0.0
    %2196 = vmatprep.subr.mxu0 0.0
    %2197 = vmatpush1.xpose.msra.mxu0 0.0
    %2198 = vmatprep.subr.mxu0 0.0
    %2199 = vmatpush1.xpose.msra.mxu0 0.0
    %2200 = vmatprep.subr.mxu0 0.0
    %2201 = vmatpush1.xpose.msra.mxu0 0.0
    %2202 = vmatprep.subr.mxu0 0.0
    %2203 = vmatpush1.xpose.msra.mxu0 0.0
    %2204 = vmatprep.subr.mxu0 0.0
    %2205 = vmatpush1.xpose.msra.mxu0 0.0
    %2206 = vmatprep.subr.mxu0 0.0
    %2207 = vmatpush1.xpose.msra.mxu0 0.0
    %2208 = vmatprep.subr.mxu0 0.0
    %2209 = vmatpush1.xpose.msra.mxu0 0.0
    %2210 = vmatprep.subr.mxu0 0.0
    %2211 = vmatpush1.xpose.msra.mxu0 0.0
    %2212 = vmatprep.subr.mxu0 0.0
    %2213 = vmatpush1.xpose.msra.mxu0 %v2186
    %2214 = vmatprep.subr.mxu0 0.0
    %2215 = vmatpush1.xpose.msra.mxu0 %v2183
    %2216 = vmatprep.subr.mxu0 0.0
    %2217 = vmatpush1.xpose.msra.mxu0 %v2180
    %2218 = vmatprep.subr.mxu0 0.0
    %2219 = vmatpush1.xpose.msra.mxu0 %v2177
    %2220 = vmatprep.subr.mxu0 0.0
    %2221 = vmatpush2.xpose.msra.mxu0 0.0
    %2222 = vmatprep.subr.mxu0 0.0
    %2223 = vmatpush2.xpose.msra.mxu0 0.0
    %2224 = vmatprep.subr.mxu0 0.0
    %2225 = vmatpush2.xpose.msra.mxu0 0.0
    %2226 = vmatprep.subr.mxu0 0.0
    %2227 = vmatpush2.xpose.msra.mxu0 0.0
    %2228 = vmatprep.subr.mxu0 0.0
    %2229 = vmatpush2.xpose.msra.mxu0 0.0
    %2230 = vmatprep.subr.mxu0 0.0
    %2231 = vmatpush2.xpose.msra.mxu0 0.0
    %2232 = vmatprep.subr.mxu0 0.0
    %2233 = vmatpush2.xpose.msra.mxu0 0.0
    %2234 = vmatprep.subr.mxu0 0.0
    %2235 = vmatpush2.xpose.msra.mxu0 0.0
    %2236 = vmatprep.subr.mxu0 0.0
    %2237 = vmatpush2.xpose.msra.mxu0 0.0
    %2238 = vmatprep.subr.mxu0 0.0
    %2239 = vmatpush2.xpose.msra.mxu0 0.0
    %2240 = vmatprep.subr.mxu0 0.0
    %2241 = vmatpush2.xpose.msra.mxu0 0.0
    %2242 = vmatprep.subr.mxu0 0.0
    %2243 = vmatpush2.xpose.msra.mxu0 0.0
    %2244 = vmatprep.subr.mxu0 0.0
    %2245 = vmatpush2.xpose.msra.mxu0 0.0
    %2246 = vmatprep.subr.mxu0 0.0
    %2247 = vmatpush2.xpose.msra.mxu0 0.0
    %2248 = vmatprep.subr.mxu0 0.0
    %2249 = vmatpush2.xpose.msra.mxu0 0.0
    %2250 = vmatprep.subr.mxu0 0.0
    %2251 = vmatpush2.xpose.msra.mxu0 0.0
    %2252 = vmatprep.mubr.f32.mxu0 0.0
    %2253 = vmatmul.mubr.f32.gmra.mxu0 %v2174
    %v2254 = vpop.f32.mrf.mxu0
    %v2255 = vadd.f32 0.0, %v2254
    %v2256 = vpop.f32.mrf.mxu0
    %2257 = vdwg.mxu0
    %v2259 = vsel %vm85, %v1740, 0
    %v2262 = vsel %vm85, %v1617, 0
    %v2265 = vsel %vm85, %v1619, 0
    %v2268 = vsel %vm85, %v1621, 0
    %v2271 = vsel %vm85, %v1623, 0
    %2273 = vmatprep.subr.mxu0 0.0
    %2274 = vmatpush1.xpose.msra.mxu0 0.0
    %2275 = vmatprep.subr.mxu0 0.0
    %2276 = vmatpush1.xpose.msra.mxu0 0.0
    %2277 = vmatprep.subr.mxu0 0.0
    %2278 = vmatpush1.xpose.msra.mxu0 0.0
    %2279 = vmatprep.subr.mxu0 0.0
    %2280 = vmatpush1.xpose.msra.mxu0 0.0
    %2281 = vmatprep.subr.mxu0 0.0
    %2282 = vmatpush1.xpose.msra.mxu0 0.0
    %2283 = vmatprep.subr.mxu0 0.0
    %2284 = vmatpush1.xpose.msra.mxu0 0.0
    %2285 = vmatprep.subr.mxu0 0.0
    %2286 = vmatpush1.xpose.msra.mxu0 0.0
    %2287 = vmatprep.subr.mxu0 0.0
    %2288 = vmatpush1.xpose.msra.mxu0 0.0
    %2289 = vmatprep.subr.mxu0 0.0
    %2290 = vmatpush1.xpose.msra.mxu0 0.0
    %2291 = vmatprep.subr.mxu0 0.0
    %2292 = vmatpush1.xpose.msra.mxu0 0.0
    %2293 = vmatprep.subr.mxu0 0.0
    %2294 = vmatpush1.xpose.msra.mxu0 0.0
    %2295 = vmatprep.subr.mxu0 0.0
    %2296 = vmatpush1.xpose.msra.mxu0 0.0
    %2297 = vmatprep.subr.mxu0 0.0
    %2298 = vmatpush1.xpose.msra.mxu0 %v2271
    %2299 = vmatprep.subr.mxu0 0.0
    %2300 = vmatpush1.xpose.msra.mxu0 %v2268
    %2301 = vmatprep.subr.mxu0 0.0
    %2302 = vmatpush1.xpose.msra.mxu0 %v2265
    %2303 = vmatprep.subr.mxu0 0.0
    %2304 = vmatpush1.xpose.msra.mxu0 %v2262
    %2305 = vmatprep.subr.mxu0 0.0
    %2306 = vmatpush2.xpose.msra.mxu0 0.0
    %2307 = vmatprep.subr.mxu0 0.0
    %2308 = vmatpush2.xpose.msra.mxu0 0.0
    %2309 = vmatprep.subr.mxu0 0.0
    %2310 = vmatpush2.xpose.msra.mxu0 0.0
    %2311 = vmatprep.subr.mxu0 0.0
    %2312 = vmatpush2.xpose.msra.mxu0 0.0
    %2313 = vmatprep.subr.mxu0 0.0
    %2314 = vmatpush2.xpose.msra.mxu0 0.0
    %2315 = vmatprep.subr.mxu0 0.0
    %2316 = vmatpush2.xpose.msra.mxu0 0.0
    %2317 = vmatprep.subr.mxu0 0.0
    %2318 = vmatpush2.xpose.msra.mxu0 0.0
    %2319 = vmatprep.subr.mxu0 0.0
    %2320 = vmatpush2.xpose.msra.mxu0 0.0
    %2321 = vmatprep.subr.mxu0 0.0
    %2322 = vmatpush2.xpose.msra.mxu0 0.0
    %2323 = vmatprep.subr.mxu0 0.0
    %2324 = vmatpush2.xpose.msra.mxu0 0.0
    %2325 = vmatprep.subr.mxu0 0.0
    %2326 = vmatpush2.xpose.msra.mxu0 0.0
    %2327 = vmatprep.subr.mxu0 0.0
    %2328 = vmatpush2.xpose.msra.mxu0 0.0
    %2329 = vmatprep.subr.mxu0 0.0
    %2330 = vmatpush2.xpose.msra.mxu0 0.0
    %2331 = vmatprep.subr.mxu0 0.0
    %2332 = vmatpush2.xpose.msra.mxu0 0.0
    %2333 = vmatprep.subr.mxu0 0.0
    %2334 = vmatpush2.xpose.msra.mxu0 0.0
    %2335 = vmatprep.subr.mxu0 0.0
    %2336 = vmatpush2.xpose.msra.mxu0 0.0
    %2337 = vmatprep.mubr.f32.mxu0 0.0
    %2338 = vmatmul.mubr.f32.gmra.mxu0 %v2259
    %v2339 = vpop.f32.mrf.mxu0
    %v2340 = vadd.f32 0.0, %v2339
    %v2341 = vpop.f32.mrf.mxu0
    %2342 = vdwg.mxu0
    %v2344 = vsel %vm85, %v1745, 0
    %v2347 = vsel %vm85, %v1625, 0
    %v2350 = vsel %vm85, %v1627, 0
    %v2353 = vsel %vm85, %v1629, 0
    %v2356 = vsel %vm85, %v1631, 0
    %2358 = vmatprep.subr.mxu0 0.0
    %2359 = vmatpush1.xpose.msra.mxu0 0.0
    %2360 = vmatprep.subr.mxu0 0.0
    %2361 = vmatpush1.xpose.msra.mxu0 0.0
    %2362 = vmatprep.subr.mxu0 0.0
    %2363 = vmatpush1.xpose.msra.mxu0 0.0
    %2364 = vmatprep.subr.mxu0 0.0
    %2365 = vmatpush1.xpose.msra.mxu0 0.0
    %2366 = vmatprep.subr.mxu0 0.0
    %2367 = vmatpush1.xpose.msra.mxu0 0.0
    %2368 = vmatprep.subr.mxu0 0.0
    %2369 = vmatpush1.xpose.msra.mxu0 0.0
    %2370 = vmatprep.subr.mxu0 0.0
    %2371 = vmatpush1.xpose.msra.mxu0 0.0
    %2372 = vmatprep.subr.mxu0 0.0
    %2373 = vmatpush1.xpose.msra.mxu0 0.0
    %2374 = vmatprep.subr.mxu0 0.0
    %2375 = vmatpush1.xpose.msra.mxu0 0.0
    %2376 = vmatprep.subr.mxu0 0.0
    %2377 = vmatpush1.xpose.msra.mxu0 0.0
    %2378 = vmatprep.subr.mxu0 0.0
    %2379 = vmatpush1.xpose.msra.mxu0 0.0
    %2380 = vmatprep.subr.mxu0 0.0
    %2381 = vmatpush1.xpose.msra.mxu0 0.0
    %2382 = vmatprep.subr.mxu0 0.0
    %2383 = vmatpush1.xpose.msra.mxu0 %v2356
    %2384 = vmatprep.subr.mxu0 0.0
    %2385 = vmatpush1.xpose.msra.mxu0 %v2353
    %2386 = vmatprep.subr.mxu0 0.0
    %2387 = vmatpush1.xpose.msra.mxu0 %v2350
    %2388 = vmatprep.subr.mxu0 0.0
    %2389 = vmatpush1.xpose.msra.mxu0 %v2347
    %2390 = vmatprep.subr.mxu0 0.0
    %2391 = vmatpush2.xpose.msra.mxu0 0.0
    %2392 = vmatprep.subr.mxu0 0.0
    %2393 = vmatpush2.xpose.msra.mxu0 0.0
    %2394 = vmatprep.subr.mxu0 0.0
    %2395 = vmatpush2.xpose.msra.mxu0 0.0
    %2396 = vmatprep.subr.mxu0 0.0
    %2397 = vmatpush2.xpose.msra.mxu0 0.0
    %2398 = vmatprep.subr.mxu0 0.0
    %2399 = vmatpush2.xpose.msra.mxu0 0.0
    %2400 = vmatprep.subr.mxu0 0.0
    %2401 = vmatpush2.xpose.msra.mxu0 0.0
    %2402 = vmatprep.subr.mxu0 0.0
    %2403 = vmatpush2.xpose.msra.mxu0 0.0
    %2404 = vmatprep.subr.mxu0 0.0
    %2405 = vmatpush2.xpose.msra.mxu0 0.0
    %2406 = vmatprep.subr.mxu0 0.0
    %2407 = vmatpush2.xpose.msra.mxu0 0.0
    %2408 = vmatprep.subr.mxu0 0.0
    %2409 = vmatpush2.xpose.msra.mxu0 0.0
    %2410 = vmatprep.subr.mxu0 0.0
    %2411 = vmatpush2.xpose.msra.mxu0 0.0
    %2412 = vmatprep.subr.mxu0 0.0
    %2413 = vmatpush2.xpose.msra.mxu0 0.0
    %2414 = vmatprep.subr.mxu0 0.0
    %2415 = vmatpush2.xpose.msra.mxu0 0.0
    %2416 = vmatprep.subr.mxu0 0.0
    %2417 = vmatpush2.xpose.msra.mxu0 0.0
    %2418 = vmatprep.subr.mxu0 0.0
    %2419 = vmatpush2.xpose.msra.mxu0 0.0
    %2420 = vmatprep.subr.mxu0 0.0
    %2421 = vmatpush2.xpose.msra.mxu0 0.0
    %2422 = vmatprep.mubr.f32.mxu0 0.0
    %2423 = vmatmul.mubr.f32.gmra.mxu0 %v2344
    %v2424 = vpop.f32.mrf.mxu0
    %v2425 = vadd.f32 0.0, %v2424
    %v2426 = vpop.f32.mrf.mxu0
    %2427 = vdwg.mxu0
    %s2428 = sld [smem:[#allocation2]]
    %v2429 = vstv %s2428
    %v2430 = vmul.f32 %v2429, %v1830
    %v2431 = vmul.f32 %v2429, %v1915
    %v2432 = vmul.f32 %v2429, %v2000
    %v2433 = vmul.f32 %v2429, %v2085
    %v2434 = vmul.f32 %v2429, %v2170
    %v2435 = vmul.f32 %v2429, %v2255
    %v2436 = vmul.f32 %v2429, %v2340
    %v2437 = vmul.f32 %v2429, %v2425
    %v2438 = vadd.f32 %v2430, %v66
    %v2439 = vadd.f32 %v2431, %v67
    %v2440 = vadd.f32 %v2432, %v68
    %v2441 = vadd.f32 %v2433, %v69
    %v2442 = vadd.f32 %v2434, %v70
    %v2443 = vadd.f32 %v2435, %v71
    %v2444 = vadd.f32 %v2436, %v72
    %v2445 = vadd.f32 %v2437, %v73
    %v2454 = vrot.slane %v2439, 7
    %vm2455 = vcmask 1041409
    %v2456 = vsel %vm2455, %v2454, %v2438
    %v2457 = vrot.slane %v2440, 6
    %vm2458 = vcmask 1042434
    %v2459 = vsel %vm2458, %v2457, %v2456
    %v2460 = vrot.slane %v2441, 5
    %vm2461 = vcmask 1043459
    %v2462 = vsel %vm2461, %v2460, %v2459
    %v2463 = vrot.slane %v2442, 4
    %vm2464 = vcmask 1044484
    %v2465 = vsel %vm2464, %v2463, %v2462
    %v2466 = vrot.slane %v2443, 3
    %vm2467 = vcmask 1045509
    %v2468 = vsel %vm2467, %v2466, %v2465
    %v2469 = vrot.slane %v2444, 2
    %vm2470 = vcmask 1046534
    %v2471 = vsel %vm2470, %v2469, %v2468
    %v2472 = vrot.slane %v2445, 1
    %vm2473 = vcmask 1047559
    %v2474 = vsel %vm2473, %v2472, %v2471
    %v2476 = vrot.slane %v2438, 1
    %v2477 = vsel %vm2455, %v2439, %v2476
    %v2478 = vrot.slane %v2440, 7
    %v2479 = vsel %vm2458, %v2478, %v2477
    %v2480 = vrot.slane %v2441, 6
    %v2481 = vsel %vm2461, %v2480, %v2479
    %v2482 = vrot.slane %v2442, 5
    %v2483 = vsel %vm2464, %v2482, %v2481
    %v2484 = vrot.slane %v2443, 4
    %v2485 = vsel %vm2467, %v2484, %v2483
    %v2486 = vrot.slane %v2444, 3
    %v2487 = vsel %vm2470, %v2486, %v2485
    %v2488 = vrot.slane %v2445, 2
    %v2489 = vsel %vm2473, %v2488, %v2487
    %2490 = vrot.lane.b32.xlu0 %v2489, 32
    %v2491 = vpop.permute.xlu0 %2490
    %v2493 = vrot.slane %v2438, 2
    %v2494 = vrot.slane %v2439, 1
    %v2495 = vsel %vm2455, %v2494, %v2493
    %v2496 = vsel %vm2458, %v2440, %v2495
    %v2497 = vrot.slane %v2441, 7
    %v2498 = vsel %vm2461, %v2497, %v2496
    %v2499 = vrot.slane %v2442, 6
    %v2500 = vsel %vm2464, %v2499, %v2498
    %v2501 = vrot.slane %v2443, 5
    %v2502 = vsel %vm2467, %v2501, %v2500
    %v2503 = vrot.slane %v2444, 4
    %v2504 = vsel %vm2470, %v2503, %v2502
    %v2505 = vrot.slane %v2445, 3
    %v2506 = vsel %vm2473, %v2505, %v2504
    %2507 = vrot.lane.b32.xlu0 %v2506, 64
    %v2508 = vpop.permute.xlu0 %2507
    %v2510 = vrot.slane %v2438, 3
    %v2511 = vrot.slane %v2439, 2
    %v2512 = vsel %vm2455, %v2511, %v2510
    %v2513 = vrot.slane %v2440, 1
    %v2514 = vsel %vm2458, %v2513, %v2512
    %v2515 = vsel %vm2461, %v2441, %v2514
    %v2516 = vrot.slane %v2442, 7
    %v2517 = vsel %vm2464, %v2516, %v2515
    %v2518 = vrot.slane %v2443, 6
    %v2519 = vsel %vm2467, %v2518, %v2517
    %v2520 = vrot.slane %v2444, 5
    %v2521 = vsel %vm2470, %v2520, %v2519
    %v2522 = vrot.slane %v2445, 4
    %v2523 = vsel %vm2473, %v2522, %v2521
    %2524 = vrot.lane.b32.xlu0 %v2523, 96
    %v2525 = vpop.permute.xlu0 %2524
    %v2527 = vrot.slane %v2438, 4
    %v2528 = vrot.slane %v2439, 3
    %v2529 = vsel %vm2455, %v2528, %v2527
    %v2530 = vrot.slane %v2440, 2
    %v2531 = vsel %vm2458, %v2530, %v2529
    %v2532 = vrot.slane %v2441, 1
    %v2533 = vsel %vm2461, %v2532, %v2531
    %v2534 = vsel %vm2464, %v2442, %v2533
    %v2535 = vrot.slane %v2443, 7
    %v2536 = vsel %vm2467, %v2535, %v2534
    %v2537 = vrot.slane %v2444, 6
    %v2538 = vsel %vm2470, %v2537, %v2536
    %v2539 = vrot.slane %v2445, 5
    %v2540 = vsel %vm2473, %v2539, %v2538
    %v2542 = vrot.slane %v2438, 5
    %v2543 = vrot.slane %v2439, 4
    %v2544 = vsel %vm2455, %v2543, %v2542
    %v2545 = vrot.slane %v2440, 3
    %v2546 = vsel %vm2458, %v2545, %v2544
    %v2547 = vrot.slane %v2441, 2
    %v2548 = vsel %vm2461, %v2547, %v2546
    %v2549 = vrot.slane %v2442, 1
    %v2550 = vsel %vm2464, %v2549, %v2548
    %v2551 = vsel %vm2467, %v2443, %v2550
    %v2552 = vrot.slane %v2444, 7
    %v2553 = vsel %vm2470, %v2552, %v2551
    %v2554 = vrot.slane %v2445, 6
    %v2555 = vsel %vm2473, %v2554, %v2553
    %2556 = vrot.lane.b32.xlu0 %v2555, 32
    %v2557 = vpop.permute.xlu0 %2556
    %v2559 = vrot.slane %v2438, 6
    %v2560 = vrot.slane %v2439, 5
    %v2561 = vsel %vm2455, %v2560, %v2559
    %v2562 = vrot.slane %v2440, 4
    %v2563 = vsel %vm2458, %v2562, %v2561
    %v2564 = vrot.slane %v2441, 3
    %v2565 = vsel %vm2461, %v2564, %v2563
    %v2566 = vrot.slane %v2442, 2
    %v2567 = vsel %vm2464, %v2566, %v2565
    %v2568 = vrot.slane %v2443, 1
    %v2569 = vsel %vm2467, %v2568, %v2567
    %v2570 = vsel %vm2470, %v2444, %v2569
    %v2571 = vrot.slane %v2445, 7
    %v2572 = vsel %vm2473, %v2571, %v2570
    %2573 = vrot.lane.b32.xlu0 %v2572, 64
    %v2574 = vpop.permute.xlu0 %2573
    %v2576 = vrot.slane %v2438, 7
    %v2577 = vrot.slane %v2439, 6
    %v2578 = vsel %vm2455, %v2577, %v2576
    %v2579 = vrot.slane %v2440, 5
    %v2580 = vsel %vm2458, %v2579, %v2578
    %v2581 = vrot.slane %v2441, 4
    %v2582 = vsel %vm2461, %v2581, %v2580
    %v2583 = vrot.slane %v2442, 3
    %v2584 = vsel %vm2464, %v2583, %v2582
    %v2585 = vrot.slane %v2443, 2
    %v2586 = vsel %vm2467, %v2585, %v2584
    %v2587 = vrot.slane %v2444, 1
    %v2588 = vsel %vm2470, %v2587, %v2586
    %v2589 = vsel %vm2473, %v2445, %v2588
    %2590 = vrot.lane.b32.xlu0 %v2589, 96
    %v2591 = vpop.permute.xlu0 %2590
    %v2593 = vsel %vm85, %v2474, %v2491
    %vm2594 = vcmask 523264
    %v2595 = vsel %vm2594, %v2593, %v2508
    %vm2596 = vcmask 785408
    %v2597 = vsel %vm2596, %v2595, %v2525
    %v2598 = vsel %vm85, %v2540, %v2557
    %v2599 = vsel %vm2594, %v2598, %v2574
    %v2600 = vsel %vm2596, %v2599, %v2591
    %2601 = vst [vmem:[#allocation9] sm:$0xff] %v2597
    %2602 = vst [vmem:[#allocation9 + $0x8] sm:$0xff] %v2600
    // Predicated region
    $region38: #{tpu_custom_call.1} parent=1 // pred_check
      _
    $region39: #{tpu_custom_call.1} parent=1 // pred_check_branch
      %2604 = sbr.rel (0) target = $region41
    $region40: #{tpu_custom_call.1} parent=1 // pred_region
      %s2606 = ssub.s32 256, 256
      %2607 = vsyncadd [#allocation5], %s2606
      %s2609 = sshll.u32 [#allocation9], 4
      %s2610 = int_to_ptr.vmem [resolvable:$true] %s2609
      %2612 = dma.vmem_to_hbm [thread:$0]  %s2610, 256, %s6, [#allocation5]
    $region41: #{tpu_custom_call.1} parent=1 // pred_fallthru
      _
    // Predicated region
    $region42: #{tpu_custom_call.1} parent=1 // pred_check
      _
    $region43: #{tpu_custom_call.1} parent=1 // pred_check_branch
      %2614 = sbr.rel (0) target = $region45
    $region44: #{tpu_custom_call.1} parent=1 // pred_region
      %2615 = dma.done [#allocation5], 256
    $region45: #{tpu_custom_call.1} parent=1 // pred_fallthru
      _
    %2616 = vsyncpa [#allocation4], 1
    %2617 = vsyncpa [#allocation7], 1
    %2618 = vsyncpa [#allocation5], 1

</llo_original>
